<compile_context>
chip_gen: v5e
topology: v5e:2x2
jax: 0.10.0
libtpu: 0.0.40
codegen_flags: <defaults>
</compile_context>

<pallas_src>
import functools

import jax
import jax.numpy as jnp
from jax.scipy.special import erf as _erf_exact
from jax.experimental import pallas as pl
from jax.experimental.pallas import tpu as pltpu


def _erf(x):
    # Abramowitz & Stegun 7.1.26 rational approximation (|err| < 1.5e-7):
    # float32-accurate, matches torch's exact-GELU erf well within tolerance.
    a1, a2, a3, a4, a5 = 0.254829592, -0.284496736, 1.421413741, -1.453152027, 1.061405429
    p = 0.3275911
    ax = jnp.abs(x)
    t = 1.0 / (1.0 + p * ax)
    poly = ((((a5 * t + a4) * t + a3) * t + a2) * t + a1) * t
    y = 1.0 - poly * jnp.exp(-ax * ax)
    return jnp.where(x < 0, -y, y)


def _gelu_exact(x):
    return 0.5 * x * (1.0 + _erf(x * 0.7071067811865476))


def _np9_shifts(step):
    # (dh, dw) per group in the torch concat order [c, t, b, r, l, tr, tl, br, bl];
    # out[h, w] = group[h - dh, w - dw] (zero outside).  Derived from the exact
    # F.pad + torch.narrow sequence of ShiftedPillarsConcatentation_BNAct_NP9.
    return ((0, 0),           # c : identity
            (0, 0),           # t : pad bottom by step, narrow from 0 -> identity
            (step - 1, 0),    # b : pad top by step,    narrow from 1
            (0, step),        # r
            (0, -1),          # l
            (-1, step),       # tr
            (-1, -1),         # tl
            (step, step),     # br
            (step, -1))       # bl


def _spc9_kernel(x_ref, scale_ref, shift_ref, w5_ref, b5_ref, wf_ref, bf_ref,
                 cmask_ref, o_ref, *, H, W, C, shifts):
    HW = H * W
    C9 = C // 9

    x = x_ref[0]                                                   # (C, HW) f32
    # Inference BatchNorm folded to per-channel scale/shift, then exact GELU.
    xg = _gelu_exact(x * scale_ref[...] + shift_ref[...])

    # Nine fused 1x1 convs (C -> C//9 each) as ONE single-pass bf16 MXU matmul
    # with f32 accumulation; per-group bias added in f32 (matches torch conv).
    z = jnp.dot(w5_ref[...], xg.astype(jnp.bfloat16),
                preferred_element_type=jnp.float32) + b5_ref[...]  # (C, HW)

    # Zero-pad the flattened spatial (lane) axis once; every directional shift
    # is then a *static* lane slice of `zp` (zero fill handles the row bound),
    # plus a per-column mask for the horizontal component (kills row wrap).
    offs = [dh * W + dw for (dh, dw) in shifts]
    pad_l = max(0, max(offs))
    pad_r = max(0, -min(offs))
    parts = []
    if pad_l:
        parts.append(jnp.zeros((C, pad_l), jnp.float32))
    parts.append(z)
    if pad_r:
        parts.append(jnp.zeros((C, pad_r), jnp.float32))
    zp = jnp.concatenate(parts, axis=1) if len(parts) > 1 else z

    groups = []
    for g, (dh, dw) in enumerate(shifts):
        start = pad_l - (dh * W + dw)
        zg = zp[g * C9:(g + 1) * C9, start:start + HW]             # (C9, HW)
        if dw != 0:                                                # column-shifted groups only
            zg = zg * cmask_ref[g]                                 # (1, HW) mask broadcast
        groups.append(zg)
    # concat([c,t,b,r,l,tr,tl,br,bl], channel): narrow C//9-wide pieces only.
    cat = jnp.concatenate(groups, axis=0).astype(jnp.bfloat16)     # (C, HW)

    out = jnp.dot(wf_ref[...], cat,
                  preferred_element_type=jnp.float32) + bf_ref[...]
    o_ref[0] = out                                                 # lane-dense store


def shifted_pillars_np9_forward(x_nchw, params, *, step):
    """Forward of ShiftedPillarsConcatentation_BNAct_NP9 (eval mode), NCHW in/out."""
    B, C, H, W = x_nchw.shape
    assert C % 9 == 0, "channels must be divisible by 9 (as the torch module requires)"
    assert step >= 1, "step must be >= 1"
    HW = H * W
    eps = 1e-5

    # Fold inference BatchNorm into per-channel scale/shift.
    scale = params["bn_gamma"] / jnp.sqrt(params["bn_var"] + eps)
    shift = params["bn_beta"] - params["bn_mean"] * scale

    # Pack the nine 1x1-conv weights/biases, rows ordered like the torch concat.
    order = ("c", "t", "b", "r", "l", "tr", "tl", "br", "bl")
    w5 = jnp.concatenate([params[f"w_{k}"] for k in order], axis=0)     # (C, C)
    b5 = jnp.concatenate([params[f"b_{k}"] for k in order], axis=0)     # (C,)
    wf = params["w_fuse"]                                               # (C, C)
    bf = params["b_fuse"]                                               # (C,)

    shifts = _np9_shifts(step)

    # Per-group column-validity masks (zero where the shifted source column is
    # outside [0, W)).  Row validity is handled by zero padding inside the kernel.
    wcol = jnp.arange(HW, dtype=jnp.int32) % W
    cmasks = jnp.stack(
        [((wcol - dw >= 0) & (wcol - dw < W)).astype(jnp.float32)
         for (_, dw) in shifts]).reshape(9, 1, HW)

    # NCHW -> (B, C, H*W) is a pure reshape: H*W (multiple of 128 here) on lanes.
    x_flat = x_nchw.reshape(B, C, HW).astype(jnp.float32)

    kernel = functools.partial(_spc9_kernel, H=H, W=W, C=C, shifts=shifts)
    flops = B * (4 * C * C * HW + 16 * C * HW)          # 2 matmul stages + elementwise
    bytes_accessed = (B * HW * C * 4 * 2                # activations in + out (f32)
                      + 2 * C * C * 2                   # bf16 weights
                      + 4 * C * 4 + 9 * HW * 4)         # biases/scales + masks

    out_flat = pl.pallas_call(
        kernel,
        out_shape=jax.ShapeDtypeStruct((B, C, HW), jnp.float32),
        grid=(B,),
        in_specs=[
            pl.BlockSpec((1, C, HW), lambda b: (b, 0, 0)),   # x (per-image tile)
            pl.BlockSpec((C, 1), lambda b: (0, 0)),          # BN scale
            pl.BlockSpec((C, 1), lambda b: (0, 0)),          # BN shift
            pl.BlockSpec((C, C), lambda b: (0, 0)),          # fused 9-conv weight (bf16)
            pl.BlockSpec((C, 1), lambda b: (0, 0)),          # fused 9-conv bias
            pl.BlockSpec((C, C), lambda b: (0, 0)),          # cs_fuse weight (bf16)
            pl.BlockSpec((C, 1), lambda b: (0, 0)),          # cs_fuse bias
            pl.BlockSpec((9, 1, HW), lambda b: (0, 0, 0)),   # column-shift masks
        ],
        out_specs=pl.BlockSpec((1, C, HW), lambda b: (b, 0, 0)),
        compiler_params=pltpu.CompilerParams(
            dimension_semantics=("parallel",),               # megacore / v7x dual-TC
            vmem_limit_bytes=16 * 1024 * 1024),
        cost_estimate=pl.CostEstimate(
            flops=flops,
            transcendentals=B * C * HW,                      # one exp per element (GELU)
            bytes_accessed=bytes_accessed),
    )(x_flat, scale[:, None], shift[:, None], w5.astype(jnp.bfloat16),
      b5[:, None], wf.astype(jnp.bfloat16), bf[:, None], cmasks)

    return out_flat.reshape(B, C, H, W)


def reference_forward(x_nchw, params, *, step, matmul_dtype=jnp.float32):
    """Pure-JAX NCHW reference mirroring the PyTorch forward op-for-op.

    matmul_dtype=float32  -> exact f32 reference (torch semantics).
    matmul_dtype=bfloat16 -> operands rounded like the kernel's bf16 MXU passes.
    """
    eps = 1e-5
    g, be, m, v = (params["bn_gamma"], params["bn_beta"],
                   params["bn_mean"], params["bn_var"])
    x = ((x_nchw - m[None, :, None, None]) / jnp.sqrt(v[None, :, None, None] + eps)
         * g[None, :, None, None] + be[None, :, None, None])
    x = 0.5 * x * (1.0 + _erf_exact(x / jnp.sqrt(2.0)))

    def conv1x1(y, w, b=None):
        out = jnp.einsum("oc,bchw->bohw", w.astype(matmul_dtype), y.astype(matmul_dtype),
                         precision="highest", preferred_element_type=jnp.float32)
        return out if b is None else out + b[None, :, None, None]

    B, C, H, W = x.shape
    s = step
    x_c = conv1x1(x, params["w_c"], params["b_c"])
    x_t = conv1x1(x, params["w_t"], params["b_t"])
    x_b = conv1x1(x, params["w_b"], params["b_b"])
    x_r = conv1x1(x, params["w_r"], params["b_r"])
    x_l = conv1x1(x, params["w_l"], params["b_l"])
    x_tr = conv1x1(x, params["w_tr"], params["b_tr"])
    x_tl = conv1x1(x, params["w_tl"], params["b_tl"])
    x_br = conv1x1(x, params["w_br"], params["b_br"])
    x_bl = conv1x1(x, params["w_bl"], params["b_bl"])

    # Exact translation of the torch F.pad + torch.narrow sequences.
    x_t = jnp.pad(x_t, ((0, 0), (0, 0), (0, s), (0, 0)))[:, :, 0:H, :]
    x_b = jnp.pad(x_b, ((0, 0), (0, 0), (s, 0), (0, 0)))[:, :, 1:1 + H, :]
    x_l = jnp.pad(x_l, ((0, 0), (0, 0), (0, 0), (0, s)))[:, :, :, 1:1 + W]
    x_r = jnp.pad(x_r, ((0, 0), (0, 0), (0, 0), (s, 0)))[:, :, :, 0:W]
    x_tl = jnp.pad(x_tl, ((0, 0), (0, 0), (0, s), (0, 0)))[:, :, 1:1 + H, :]
    x_tl = jnp.pad(x_tl, ((0, 0), (0, 0), (0, 0), (0, s)))[:, :, :, 1:1 + W]
    x_tr = jnp.pad(x_tr, ((0, 0), (0, 0), (0, s), (0, 0)))[:, :, 1:1 + H, :]
    x_tr = jnp.pad(x_tr, ((0, 0), (0, 0), (0, 0), (s, 0)))[:, :, :, 0:W]
    x_bl = jnp.pad(x_bl, ((0, 0), (0, 0), (s, 0), (0, 0)))[:, :, 0:H, :]
    x_bl = jnp.pad(x_bl, ((0, 0), (0, 0), (0, 0), (0, s)))[:, :, :, 1:1 + W]
    x_br = jnp.pad(x_br, ((0, 0), (0, 0), (s, 0), (0, 0)))[:, :, 0:H, :]
    x_br = jnp.pad(x_br, ((0, 0), (0, 0), (0, 0), (s, 0)))[:, :, :, 0:W]

    cat = jnp.concatenate([x_c, x_t, x_b, x_r, x_l, x_tr, x_tl, x_br, x_bl], axis=1)
    return conv1x1(cat, params["w_fuse"], params["b_fuse"])


if __name__ == "__main__":
    B, C, H, W, step = 2, 36, 16, 16, 2
    C9 = C // 9

    key = jax.random.PRNGKey(0)
    ks = jax.random.split(key, 25)

    def nrm(k, shape, scale=1.0):
        return scale * jax.random.normal(k, shape, dtype=jnp.float32)

    s_w = 1.0 / (C ** 0.5)
    params = {
        "bn_gamma": 1.0 + 0.1 * nrm(ks[0], (C,)),
        "bn_beta": 0.1 * nrm(ks[1], (C,)),
        "bn_mean": 0.1 * nrm(ks[2], (C,)),
        "bn_var": 0.5 + jax.random.uniform(ks[3], (C,), dtype=jnp.float32),
        "w_fuse": nrm(ks[4], (C, C), s_w),
        "b_fuse": 0.05 * nrm(ks[5], (C,)),
    }
    names = ("c", "t", "b", "r", "l", "tr", "tl", "br", "bl")
    for i, n in enumerate(names):
        params[f"w_{n}"] = nrm(ks[6 + 2 * i], (C9, C), s_w)
        params[f"b_{n}"] = 0.05 * nrm(ks[7 + 2 * i], (C9,))

    x = jax.random.normal(ks[24], (B, C, H, W), dtype=jnp.float32)

    # Jit the whole forward so the BN folding / weight packing / casts / mask build
    # fuse into one compiled program around the pallas_call.
    fwd = jax.jit(functools.partial(shifted_pillars_np9_forward, step=step))
    out = fwd(x, params)
    out = jax.block_until_ready(out)
    assert out.shape == (B, C, H, W)

    # (1) Tight check vs a reference whose matmul operands are rounded to bf16
    #     exactly like the kernel's single-pass MXU matmuls (f32 accumulation).
    ref_b = reference_forward(x, params, step=step, matmul_dtype=jnp.bfloat16)
    err_b = float(jnp.max(jnp.abs(out - ref_b)))
    assert jnp.allclose(out, ref_b, atol=8e-3, rtol=8e-3), f"bf16-matched max err = {err_b}"

    # (2) Check vs the exact f32 reference (torch semantics); tolerance reflects
    #     the expected rounding of single-pass bf16 MXU matmuls at these scales.
    ref_f = reference_forward(x, params, step=step, matmul_dtype=jnp.float32)
    err_f = float(jnp.max(jnp.abs(out - ref_f)))
    assert jnp.allclose(out, ref_f, atol=2.5e-2, rtol=2.5e-2), f"f32-exact max err = {err_f}"

    print("KERNEL_OK")
</pallas_src>

<mosaic_0001>
module attributes {stable_mosaic.version = 11 : i64} {
  func.func @_spc9_kernel(%arg0: i32, %arg1: memref<1x36x256xf32, #tpu.memory_space<vmem>>, %arg2: memref<36x1xf32, #tpu.memory_space<vmem>>, %arg3: memref<36x1xf32, #tpu.memory_space<vmem>>, %arg4: memref<36x36xbf16, #tpu.memory_space<vmem>>, %arg5: memref<36x1xf32, #tpu.memory_space<vmem>>, %arg6: memref<36x36xbf16, #tpu.memory_space<vmem>>, %arg7: memref<36x1xf32, #tpu.memory_space<vmem>>, %arg8: memref<9x1x256xf32, #tpu.memory_space<vmem>>, %arg9: memref<1x36x256xf32, #tpu.memory_space<vmem>>) attributes {dimension_semantics = [#tpu.dimension_semantics<parallel>], iteration_bounds = array<i64: 2>, scalar_prefetch = 0 : i64, scratch_operands = 0 : i64, tpu.core_type = #tpu.core_type<tc>, window_params = [{transform_indices = @transform_0, window_bounds = array<i64: 1, 36, 256>}, {pipeline_mode = #tpu.pipeline_mode<synchronous>, transform_indices = @transform_1, window_bounds = array<i64: 36, 1>}, {pipeline_mode = #tpu.pipeline_mode<synchronous>, transform_indices = @transform_2, window_bounds = array<i64: 36, 1>}, {pipeline_mode = #tpu.pipeline_mode<synchronous>, transform_indices = @transform_3, window_bounds = array<i64: 36, 36>}, {pipeline_mode = #tpu.pipeline_mode<synchronous>, transform_indices = @transform_4, window_bounds = array<i64: 36, 1>}, {pipeline_mode = #tpu.pipeline_mode<synchronous>, transform_indices = @transform_5, window_bounds = array<i64: 36, 36>}, {pipeline_mode = #tpu.pipeline_mode<synchronous>, transform_indices = @transform_6, window_bounds = array<i64: 36, 1>}, {pipeline_mode = #tpu.pipeline_mode<synchronous>, transform_indices = @transform_7, window_bounds = array<i64: 9, 1, 256>}, {transform_indices = @transform_8, window_bounds = array<i64: 1, 36, 256>}]} {
    %c0 = arith.constant 0 : index
    %c0_0 = arith.constant 0 : index
    %c0_1 = arith.constant 0 : index
    %0 = vector.load %arg1[%c0, %c0_0, %c0_1] : memref<1x36x256xf32, #tpu.memory_space<vmem>>, vector<1x36x256xf32>
    %1 = vector.shape_cast %0 : vector<1x36x256xf32> to vector<36x256xf32>
    %c0_2 = arith.constant 0 : index
    %c0_3 = arith.constant 0 : index
    %2 = vector.load %arg2[%c0_2, %c0_3] : memref<36x1xf32, #tpu.memory_space<vmem>>, vector<36x1xf32>
    %3 = vector.broadcast %2 : vector<36x1xf32> to vector<36x256xf32>
    %4 = arith.mulf %1, %3 : vector<36x256xf32>
    %c0_4 = arith.constant 0 : index
    %c0_5 = arith.constant 0 : index
    %5 = vector.load %arg3[%c0_4, %c0_5] : memref<36x1xf32, #tpu.memory_space<vmem>>, vector<36x1xf32>
    %6 = vector.broadcast %5 : vector<36x1xf32> to vector<36x256xf32>
    %7 = arith.addf %4, %6 : vector<36x256xf32>
    %cst = arith.constant 5.000000e-01 : f32
    %8 = vector.broadcast %cst : f32 to vector<36x256xf32>
    %9 = arith.mulf %8, %7 : vector<36x256xf32>
    %cst_6 = arith.constant 0.707106769 : f32
    %10 = vector.broadcast %cst_6 : f32 to vector<36x256xf32>
    %11 = arith.mulf %7, %10 : vector<36x256xf32>
    %12 = math.absf %11 : vector<36x256xf32>
    %cst_7 = arith.constant 0.327591091 : f32
    %13 = vector.broadcast %cst_7 : f32 to vector<36x256xf32>
    %14 = arith.mulf %13, %12 : vector<36x256xf32>
    %cst_8 = arith.constant 1.000000e+00 : f32
    %15 = vector.broadcast %cst_8 : f32 to vector<36x256xf32>
    %16 = arith.addf %15, %14 : vector<36x256xf32>
    %cst_9 = arith.constant 1.000000e+00 : f32
    %17 = vector.broadcast %cst_9 : f32 to vector<36x256xf32>
    %18 = arith.divf %17, %16 : vector<36x256xf32>
    %cst_10 = arith.constant 1.06140542 : f32
    %19 = vector.broadcast %cst_10 : f32 to vector<36x256xf32>
    %20 = arith.mulf %19, %18 : vector<36x256xf32>
    %cst_11 = arith.constant -1.45315206 : f32
    %21 = vector.broadcast %cst_11 : f32 to vector<36x256xf32>
    %22 = arith.addf %20, %21 : vector<36x256xf32>
    %23 = arith.mulf %22, %18 : vector<36x256xf32>
    %cst_12 = arith.constant 1.42141378 : f32
    %24 = vector.broadcast %cst_12 : f32 to vector<36x256xf32>
    %25 = arith.addf %23, %24 : vector<36x256xf32>
    %26 = arith.mulf %25, %18 : vector<36x256xf32>
    %cst_13 = arith.constant -0.284496725 : f32
    %27 = vector.broadcast %cst_13 : f32 to vector<36x256xf32>
    %28 = arith.addf %26, %27 : vector<36x256xf32>
    %29 = arith.mulf %28, %18 : vector<36x256xf32>
    %cst_14 = arith.constant 0.254829586 : f32
    %30 = vector.broadcast %cst_14 : f32 to vector<36x256xf32>
    %31 = arith.addf %29, %30 : vector<36x256xf32>
    %32 = arith.mulf %31, %18 : vector<36x256xf32>
    %cst_15 = arith.constant 0.000000e+00 : f32
    %33 = vector.broadcast %cst_15 : f32 to vector<36x256xf32>
    %34 = arith.subf %33, %12 : vector<36x256xf32>
    %35 = arith.mulf %34, %12 : vector<36x256xf32>
    %36 = math.exp %35 : vector<36x256xf32>
    %37 = arith.mulf %32, %36 : vector<36x256xf32>
    %cst_16 = arith.constant 1.000000e+00 : f32
    %38 = vector.broadcast %cst_16 : f32 to vector<36x256xf32>
    %39 = arith.subf %38, %37 : vector<36x256xf32>
    %cst_17 = arith.constant 0.000000e+00 : f32
    %40 = vector.broadcast %cst_17 : f32 to vector<36x256xf32>
    %41 = arith.cmpf olt, %11, %40 : vector<36x256xf32>
    %cst_18 = arith.constant 0.000000e+00 : f32
    %42 = vector.broadcast %cst_18 : f32 to vector<36x256xf32>
    %43 = arith.subf %42, %39 : vector<36x256xf32>
    %44 = arith.select %41, %43, %39 : vector<36x256xi1>, vector<36x256xf32>
    %cst_19 = arith.constant 1.000000e+00 : f32
    %45 = vector.broadcast %cst_19 : f32 to vector<36x256xf32>
    %46 = arith.addf %45, %44 : vector<36x256xf32>
    %47 = arith.mulf %9, %46 : vector<36x256xf32>
    %c0_20 = arith.constant 0 : index
    %c0_21 = arith.constant 0 : index
    %48 = vector.load %arg4[%c0_20, %c0_21] : memref<36x36xbf16, #tpu.memory_space<vmem>>, vector<36x36xbf16>
    %49 = arith.truncf %47 : vector<36x256xf32> to vector<36x256xbf16>
    %cst_22 = arith.constant dense<0.000000e+00> : vector<36x256xf32>
    %50 = tpu.matmul %48, %49, %cst_22 {dimension_numbers = #tpu.dot_dimension_numbers<[1], [0], [0], [1], [0, 0, 1, 1], [], []>} : vector<36x36xbf16>, vector<36x256xbf16>, vector<36x256xf32> -> vector<36x256xf32>
    %c0_23 = arith.constant 0 : index
    %c0_24 = arith.constant 0 : index
    %51 = vector.load %arg5[%c0_23, %c0_24] : memref<36x1xf32, #tpu.memory_space<vmem>>, vector<36x1xf32>
    %52 = vector.broadcast %51 : vector<36x1xf32> to vector<36x256xf32>
    %53 = arith.addf %50, %52 : vector<36x256xf32>
    %cst_25 = arith.constant 0.000000e+00 : f32
    %54 = vector.broadcast %cst_25 : f32 to vector<36x34xf32>
    %cst_26 = arith.constant 0.000000e+00 : f32
    %55 = vector.broadcast %cst_26 : f32 to vector<36x17xf32>
    %56 = tpu.concatenate %54, %53, %55 in 1 : vector<36x34xf32>, vector<36x256xf32>, vector<36x17xf32> -> vector<36x307xf32>
    %57 = vector.extract_strided_slice %56 {offsets = [0, 34], sizes = [4, 256], strides = [1, 1]} : vector<36x307xf32> to vector<4x256xf32>
    %58 = vector.extract_strided_slice %56 {offsets = [4, 34], sizes = [4, 256], strides = [1, 1]} : vector<36x307xf32> to vector<4x256xf32>
    %59 = vector.extract_strided_slice %56 {offsets = [8, 18], sizes = [4, 256], strides = [1, 1]} : vector<36x307xf32> to vector<4x256xf32>
    %60 = vector.extract_strided_slice %56 {offsets = [12, 32], sizes = [4, 256], strides = [1, 1]} : vector<36x307xf32> to vector<4x256xf32>
    %c3 = arith.constant 3 : index
    %c0_27 = arith.constant 0 : index
    %c0_28 = arith.constant 0 : index
    %61 = vector.load %arg8[%c3, %c0_27, %c0_28] : memref<9x1x256xf32, #tpu.memory_space<vmem>>, vector<1x1x256xf32>
    %62 = vector.shape_cast %61 : vector<1x1x256xf32> to vector<1x256xf32>
    %63 = vector.broadcast %62 : vector<1x256xf32> to vector<4x256xf32>
    %64 = arith.mulf %60, %63 : vector<4x256xf32>
    %65 = vector.extract_strided_slice %56 {offsets = [16, 35], sizes = [4, 256], strides = [1, 1]} : vector<36x307xf32> to vector<4x256xf32>
    %c4 = arith.constant 4 : index
    %c0_29 = arith.constant 0 : index
    %c0_30 = arith.constant 0 : index
    %66 = vector.load %arg8[%c4, %c0_29, %c0_30] : memref<9x1x256xf32, #tpu.memory_space<vmem>>, vector<1x1x256xf32>
    %67 = vector.shape_cast %66 : vector<1x1x256xf32> to vector<1x256xf32>
    %68 = vector.broadcast %67 : vector<1x256xf32> to vector<4x256xf32>
    %69 = arith.mulf %65, %68 : vector<4x256xf32>
    %70 = vector.extract_strided_slice %56 {offsets = [20, 48], sizes = [4, 256], strides = [1, 1]} : vector<36x307xf32> to vector<4x256xf32>
    %c5 = arith.constant 5 : index
    %c0_31 = arith.constant 0 : index
    %c0_32 = arith.constant 0 : index
    %71 = vector.load %arg8[%c5, %c0_31, %c0_32] : memref<9x1x256xf32, #tpu.memory_space<vmem>>, vector<1x1x256xf32>
    %72 = vector.shape_cast %71 : vector<1x1x256xf32> to vector<1x256xf32>
    %73 = vector.broadcast %72 : vector<1x256xf32> to vector<4x256xf32>
    %74 = arith.mulf %70, %73 : vector<4x256xf32>
    %75 = vector.extract_strided_slice %56 {offsets = [24, 51], sizes = [4, 256], strides = [1, 1]} : vector<36x307xf32> to vector<4x256xf32>
    %c6 = arith.constant 6 : index
    %c0_33 = arith.constant 0 : index
    %c0_34 = arith.constant 0 : index
    %76 = vector.load %arg8[%c6, %c0_33, %c0_34] : memref<9x1x256xf32, #tpu.memory_space<vmem>>, vector<1x1x256xf32>
    %77 = vector.shape_cast %76 : vector<1x1x256xf32> to vector<1x256xf32>
    %78 = vector.broadcast %77 : vector<1x256xf32> to vector<4x256xf32>
    %79 = arith.mulf %75, %78 : vector<4x256xf32>
    %80 = vector.extract_strided_slice %56 {offsets = [28, 0], sizes = [4, 256], strides = [1, 1]} : vector<36x307xf32> to vector<4x256xf32>
    %c7 = arith.constant 7 : index
    %c0_35 = arith.constant 0 : index
    %c0_36 = arith.constant 0 : index
    %81 = vector.load %arg8[%c7, %c0_35, %c0_36] : memref<9x1x256xf32, #tpu.memory_space<vmem>>, vector<1x1x256xf32>
    %82 = vector.shape_cast %81 : vector<1x1x256xf32> to vector<1x256xf32>
    %83 = vector.broadcast %82 : vector<1x256xf32> to vector<4x256xf32>
    %84 = arith.mulf %80, %83 : vector<4x256xf32>
    %85 = vector.extract_strided_slice %56 {offsets = [32, 3], sizes = [4, 256], strides = [1, 1]} : vector<36x307xf32> to vector<4x256xf32>
    %c8 = arith.constant 8 : index
    %c0_37 = arith.constant 0 : index
    %c0_38 = arith.constant 0 : index
    %86 = vector.load %arg8[%c8, %c0_37, %c0_38] : memref<9x1x256xf32, #tpu.memory_space<vmem>>, vector<1x1x256xf32>
    %87 = vector.shape_cast %86 : vector<1x1x256xf32> to vector<1x256xf32>
    %88 = vector.broadcast %87 : vector<1x256xf32> to vector<4x256xf32>
    %89 = arith.mulf %85, %88 : vector<4x256xf32>
    %90 = tpu.concatenate %57, %58, %59, %64, %69, %74, %79, %84, %89 in 0 : vector<4x256xf32>, vector<4x256xf32>, vector<4x256xf32>, vector<4x256xf32>, vector<4x256xf32>, vector<4x256xf32>, vector<4x256xf32>, vector<4x256xf32>, vector<4x256xf32> -> vector<36x256xf32>
    %91 = arith.truncf %90 : vector<36x256xf32> to vector<36x256xbf16>
    %c0_39 = arith.constant 0 : index
    %c0_40 = arith.constant 0 : index
    %92 = vector.load %arg6[%c0_39, %c0_40] : memref<36x36xbf16, #tpu.memory_space<vmem>>, vector<36x36xbf16>
    %cst_41 = arith.constant dense<0.000000e+00> : vector<36x256xf32>
    %93 = tpu.matmul %92, %91, %cst_41 {dimension_numbers = #tpu.dot_dimension_numbers<[1], [0], [0], [1], [0, 0, 1, 1], [], []>} : vector<36x36xbf16>, vector<36x256xbf16>, vector<36x256xf32> -> vector<36x256xf32>
    %c0_42 = arith.constant 0 : index
    %c0_43 = arith.constant 0 : index
    %94 = vector.load %arg7[%c0_42, %c0_43] : memref<36x1xf32, #tpu.memory_space<vmem>>, vector<36x1xf32>
    %95 = vector.broadcast %94 : vector<36x1xf32> to vector<36x256xf32>
    %96 = arith.addf %93, %95 : vector<36x256xf32>
    %c0_44 = arith.constant 0 : index
    %c0_45 = arith.constant 0 : index
    %c0_46 = arith.constant 0 : index
    %97 = vector.load %arg9[%c0_44, %c0_45, %c0_46] : memref<1x36x256xf32, #tpu.memory_space<vmem>>, vector<1x36x256xf32>
    %98 = vector.shape_cast %97 : vector<1x36x256xf32> to vector<36x256xf32>
    %99 = vector.shape_cast %96 : vector<36x256xf32> to vector<1x36x256xf32>
    tpu.vector_store %arg9[%c0_44, %c0_45, %c0_46], %99 {strides = array<i32>} : memref<1x36x256xf32, #tpu.memory_space<vmem>>, vector<1x36x256xf32>,
    return
  }
  func.func @transform_0(%arg0: i32) -> (i32, i32, i32) {
    %c0_i32 = arith.constant 0 : i32
    %c0_i32_0 = arith.constant 0 : i32
    %c0_i32_1 = arith.constant 0 : i32
    return %arg0, %c0_i32, %c0_i32_0 : i32, i32, i32
  }
  func.func @transform_1(%arg0: i32) -> (i32, i32) {
    %c0_i32 = arith.constant 0 : i32
    %c0_i32_0 = arith.constant 0 : i32
    %c0_i32_1 = arith.constant 0 : i32
    return %c0_i32, %c0_i32_0 : i32, i32
  }
  func.func @transform_2(%arg0: i32) -> (i32, i32) {
    %c0_i32 = arith.constant 0 : i32
    %c0_i32_0 = arith.constant 0 : i32
    %c0_i32_1 = arith.constant 0 : i32
    return %c0_i32, %c0_i32_0 : i32, i32
  }
  func.func @transform_3(%arg0: i32) -> (i32, i32) {
    %c0_i32 = arith.constant 0 : i32
    %c0_i32_0 = arith.constant 0 : i32
    %c0_i32_1 = arith.constant 0 : i32
    return %c0_i32, %c0_i32_0 : i32, i32
  }
  func.func @transform_4(%arg0: i32) -> (i32, i32) {
    %c0_i32 = arith.constant 0 : i32
    %c0_i32_0 = arith.constant 0 : i32
    %c0_i32_1 = arith.constant 0 : i32
    return %c0_i32, %c0_i32_0 : i32, i32
  }
  func.func @transform_5(%arg0: i32) -> (i32, i32) {
    %c0_i32 = arith.constant 0 : i32
    %c0_i32_0 = arith.constant 0 : i32
    %c0_i32_1 = arith.constant 0 : i32
    return %c0_i32, %c0_i32_0 : i32, i32
  }
  func.func @transform_6(%arg0: i32) -> (i32, i32) {
    %c0_i32 = arith.constant 0 : i32
    %c0_i32_0 = arith.constant 0 : i32
    %c0_i32_1 = arith.constant 0 : i32
    return %c0_i32, %c0_i32_0 : i32, i32
  }
  func.func @transform_7(%arg0: i32) -> (i32, i32, i32) {
    %c0_i32 = arith.constant 0 : i32
    %c0_i32_0 = arith.constant 0 : i32
    %c0_i32_1 = arith.constant 0 : i32
    %c0_i32_2 = arith.constant 0 : i32
    return %c0_i32, %c0_i32_0, %c0_i32_1 : i32, i32, i32
  }
  func.func @transform_8(%arg0: i32) -> (i32, i32, i32) {
    %c0_i32 = arith.constant 0 : i32
    %c0_i32_0 = arith.constant 0 : i32
    %c0_i32_1 = arith.constant 0 : i32
    return %arg0, %c0_i32, %c0_i32_0 : i32, i32, i32
  }
}

</mosaic_0001>

<llo_original>
// kernel: shifted_pillars_np9_forward.1
$region0: #{shifted_pillars_np9_forward.1}
  #allocation0 [shape = 'u32[]', space=smem, size = 0x4, offset = 0x4, fixed_abs, tag = 'smem constant byte address 0x4 - core index']
  #allocation1 [shape = 'u32[72,128]{1,0:T(1,128)}', space=vmem, size = 0x9000, scoped, tag = 'internal scratch']
  %s0 = inlined_call_operand.vmem [shape: f32[2,36,256], index: 0, kind: input, shape index: {}]
  %s1 = inlined_call_operand.vmem [shape: f32[36,1], index: 1, kind: input, shape index: {}]
  %s2 = inlined_call_operand.vmem [shape: f32[36,1], index: 2, kind: input, shape index: {}]
  %s3 = inlined_call_operand.vmem [shape: bf16[36,36], index: 3, kind: input, shape index: {}]
  %s4 = inlined_call_operand.vmem [shape: f32[36,1], index: 4, kind: input, shape index: {}]
  %s5 = inlined_call_operand.vmem [shape: bf16[36,36], index: 5, kind: input, shape index: {}]
  %s6 = inlined_call_operand.vmem [shape: f32[36,1], index: 6, kind: input, shape index: {}]
  %s7 = inlined_call_operand.vmem [shape: f32[9,1,256], index: 7, kind: input, shape index: {}]
  %s8 = inlined_call_operand.vmem [shape: f32[2,36,256], index: 8, kind: output, shape index: {}]
  %s9 = sld [smem:[#allocation0]]
  $region65: #{shifted_pillars_np9_forward.1} parent=0
    _
  %s11 = ssub.s32 1, %s9
  %s12 = scalar_select 0, %s11, %s9
  loop: start=0, step=1, limit=4
  $region2: #{shifted_pillars_np9_forward.1} parent=0 // loop_pre_header
    _
  $region3: #{shifted_pillars_np9_forward.1} parent=0 // loop_header
    %s14 = sphi 0, %s18
    %p15 = scmp.ge.s32.totalorder %s14, 4
    %s24 = sphi 0, %s26
    %s27 = sphi 0, %s24
    %s28 = sphi 0, %s27
    %s44 = sphi 0, %s28
    %s48 = sphi 0, %s48
    %s50 = sphi 0, %s48
    %s51 = sphi 0, %s50
    %s65 = sphi 0, %s51
    %s69 = sphi 0, %s69
    %s71 = sphi 0, %s69
    %s72 = sphi 0, %s71
    %s86 = sphi 0, %s72
    %s90 = sphi 0, %s90
    %s92 = sphi 0, %s90
    %s93 = sphi 0, %s92
    %s107 = sphi 0, %s93
    %s111 = sphi 0, %s111
    %s113 = sphi 0, %s111
    %s114 = sphi 0, %s113
    %s128 = sphi 0, %s114
    %s132 = sphi 0, %s132
    %s134 = sphi 0, %s132
    %s135 = sphi 0, %s134
    %s149 = sphi 0, %s135
    %s153 = sphi 0, %s153
    %s155 = sphi 0, %s153
    %s156 = sphi 0, %s155
    %s170 = sphi 0, %s156
    %s174 = sphi 0, %s174
    %s176 = sphi 0, %s174
    %s177 = sphi 0, %s176
    %s191 = sphi 0, %s177
    %s197 = sphi 0, %s199
    %s200 = sphi 0, %s197
    %s201 = sphi 0, %s200
    %s217 = sphi 0, %s201
  $region4: #{shifted_pillars_np9_forward.1} parent=0 // loop_header_branch
    %17 = sbr.rel (%p15) target = $region8
  $region5: #{shifted_pillars_np9_forward.1} parent=0 // loop_body
    %s19 = ssub.s32 %s14, 1
    %s20 = ssub.s32 %s14, 2
    %s21 = sadd.s32 %s14, 1
    %s22 = ssub.s32 %s14, %s21
    %p23 = scmp.eq.s32.totalorder %s22, 0
    %s25 = sadd.s32 %s24, 1
    %s26 = scalar_select %p23, %s24, %s25
    %p29 = pneg %p23
    %p30 = scmp.eq.s32.totalorder %s14, 1
    %p31 = por %p29, %p30
    %p32 = scmp.ne.s32.totalorder %s24, %s27
    %p33 = scmp.eq.s32.totalorder %s14, 0
    %p34 = por %p32, %p33
    %p35 = scmp.ne.s32.totalorder %s24, %s27
    %p36 = scmp.eq.s32.totalorder %s19, 1
    %p37 = por %p35, %p36
    %p38 = scmp.ne.s32.totalorder %s27, %s28
    %p39 = scmp.eq.s32.totalorder %s19, 0
    %p40 = por %p38, %p39
    %p41 = scmp.ne.s32.totalorder %s27, %s28
    %p42 = scmp.eq.s32.totalorder %s20, 1
    %p43 = por %p41, %p42
    %p45 = scmp.ne.s32.totalorder %s28, %s44
    %p46 = scmp.eq.s32.totalorder %s20, 0
    %p47 = por %p45, %p46
    %s49 = sadd.s32 %s48, 1
    %p52 = scmp.eq.s32.totalorder %s14, 1
    %p53 = scmp.ne.s32.totalorder %s48, %s50
    %p54 = scmp.eq.s32.totalorder %s14, 0
    %p55 = por %p53, %p54
    %p56 = scmp.ne.s32.totalorder %s48, %s50
    %p57 = scmp.eq.s32.totalorder %s19, 1
    %p58 = por %p56, %p57
    %p59 = scmp.ne.s32.totalorder %s50, %s51
    %p60 = scmp.eq.s32.totalorder %s19, 0
    %p61 = por %p59, %p60
    %p62 = scmp.ne.s32.totalorder %s50, %s51
    %p63 = scmp.eq.s32.totalorder %s20, 1
    %p64 = por %p62, %p63
    %p66 = scmp.ne.s32.totalorder %s51, %s65
    %p67 = scmp.eq.s32.totalorder %s20, 0
    %p68 = por %p66, %p67
    %s70 = sadd.s32 %s69, 1
    %p73 = scmp.eq.s32.totalorder %s14, 1
    %p74 = scmp.ne.s32.totalorder %s69, %s71
    %p75 = scmp.eq.s32.totalorder %s14, 0
    %p76 = por %p74, %p75
    %p77 = scmp.ne.s32.totalorder %s69, %s71
    %p78 = scmp.eq.s32.totalorder %s19, 1
    %p79 = por %p77, %p78
    %p80 = scmp.ne.s32.totalorder %s71, %s72
    %p81 = scmp.eq.s32.totalorder %s19, 0
    %p82 = por %p80, %p81
    %p83 = scmp.ne.s32.totalorder %s71, %s72
    %p84 = scmp.eq.s32.totalorder %s20, 1
    %p85 = por %p83, %p84
    %p87 = scmp.ne.s32.totalorder %s72, %s86
    %p88 = scmp.eq.s32.totalorder %s20, 0
    %p89 = por %p87, %p88
    %s91 = sadd.s32 %s90, 1
    %p94 = scmp.eq.s32.totalorder %s14, 1
    %p95 = scmp.ne.s32.totalorder %s90, %s92
    %p96 = scmp.eq.s32.totalorder %s14, 0
    %p97 = por %p95, %p96
    %p98 = scmp.ne.s32.totalorder %s90, %s92
    %p99 = scmp.eq.s32.totalorder %s19, 1
    %p100 = por %p98, %p99
    %p101 = scmp.ne.s32.totalorder %s92, %s93
    %p102 = scmp.eq.s32.totalorder %s19, 0
    %p103 = por %p101, %p102
    %p104 = scmp.ne.s32.totalorder %s92, %s93
    %p105 = scmp.eq.s32.totalorder %s20, 1
    %p106 = por %p104, %p105
    %p108 = scmp.ne.s32.totalorder %s93, %s107
    %p109 = scmp.eq.s32.totalorder %s20, 0
    %p110 = por %p108, %p109
    %s112 = sadd.s32 %s111, 1
    %p115 = scmp.eq.s32.totalorder %s14, 1
    %p116 = scmp.ne.s32.totalorder %s111, %s113
    %p117 = scmp.eq.s32.totalorder %s14, 0
    %p118 = por %p116, %p117
    %p119 = scmp.ne.s32.totalorder %s111, %s113
    %p120 = scmp.eq.s32.totalorder %s19, 1
    %p121 = por %p119, %p120
    %p122 = scmp.ne.s32.totalorder %s113, %s114
    %p123 = scmp.eq.s32.totalorder %s19, 0
    %p124 = por %p122, %p123
    %p125 = scmp.ne.s32.totalorder %s113, %s114
    %p126 = scmp.eq.s32.totalorder %s20, 1
    %p127 = por %p125, %p126
    %p129 = scmp.ne.s32.totalorder %s114, %s128
    %p130 = scmp.eq.s32.totalorder %s20, 0
    %p131 = por %p129, %p130
    %s133 = sadd.s32 %s132, 1
    %p136 = scmp.eq.s32.totalorder %s14, 1
    %p137 = scmp.ne.s32.totalorder %s132, %s134
    %p138 = scmp.eq.s32.totalorder %s14, 0
    %p139 = por %p137, %p138
    %p140 = scmp.ne.s32.totalorder %s132, %s134
    %p141 = scmp.eq.s32.totalorder %s19, 1
    %p142 = por %p140, %p141
    %p143 = scmp.ne.s32.totalorder %s134, %s135
    %p144 = scmp.eq.s32.totalorder %s19, 0
    %p145 = por %p143, %p144
    %p146 = scmp.ne.s32.totalorder %s134, %s135
    %p147 = scmp.eq.s32.totalorder %s20, 1
    %p148 = por %p146, %p147
    %p150 = scmp.ne.s32.totalorder %s135, %s149
    %p151 = scmp.eq.s32.totalorder %s20, 0
    %p152 = por %p150, %p151
    %s154 = sadd.s32 %s153, 1
    %p157 = scmp.eq.s32.totalorder %s14, 1
    %p158 = scmp.ne.s32.totalorder %s153, %s155
    %p159 = scmp.eq.s32.totalorder %s14, 0
    %p160 = por %p158, %p159
    %p161 = scmp.ne.s32.totalorder %s153, %s155
    %p162 = scmp.eq.s32.totalorder %s19, 1
    %p163 = por %p161, %p162
    %p164 = scmp.ne.s32.totalorder %s155, %s156
    %p165 = scmp.eq.s32.totalorder %s19, 0
    %p166 = por %p164, %p165
    %p167 = scmp.ne.s32.totalorder %s155, %s156
    %p168 = scmp.eq.s32.totalorder %s20, 1
    %p169 = por %p167, %p168
    %p171 = scmp.ne.s32.totalorder %s156, %s170
    %p172 = scmp.eq.s32.totalorder %s20, 0
    %p173 = por %p171, %p172
    %s175 = sadd.s32 %s174, 1
    %p178 = scmp.eq.s32.totalorder %s14, 1
    %p179 = scmp.ne.s32.totalorder %s174, %s176
    %p180 = scmp.eq.s32.totalorder %s14, 0
    %p181 = por %p179, %p180
    %p182 = scmp.ne.s32.totalorder %s174, %s176
    %p183 = scmp.eq.s32.totalorder %s19, 1
    %p184 = por %p182, %p183
    %p185 = scmp.ne.s32.totalorder %s176, %s177
    %p186 = scmp.eq.s32.totalorder %s19, 0
    %p187 = por %p185, %p186
    %p188 = scmp.ne.s32.totalorder %s176, %s177
    %p189 = scmp.eq.s32.totalorder %s20, 1
    %p190 = por %p188, %p189
    %p192 = scmp.ne.s32.totalorder %s177, %s191
    %p193 = scmp.eq.s32.totalorder %s20, 0
    %p194 = por %p192, %p193
    %s195 = ssub.s32 %s14, %s21
    %p196 = scmp.eq.s32.totalorder %s195, 0
    %s198 = sadd.s32 %s197, 1
    %s199 = scalar_select %p196, %s197, %s198
    %p202 = pneg %p196
    %p203 = scmp.eq.s32.totalorder %s14, 1
    %p204 = por %p202, %p203
    %p205 = scmp.ne.s32.totalorder %s197, %s200
    %p206 = scmp.eq.s32.totalorder %s14, 0
    %p207 = por %p205, %p206
    %p208 = scmp.ne.s32.totalorder %s197, %s200
    %p209 = scmp.eq.s32.totalorder %s19, 1
    %p210 = por %p208, %p209
    %p211 = scmp.ne.s32.totalorder %s200, %s201
    %p212 = scmp.eq.s32.totalorder %s19, 0
    %p213 = por %p211, %p212
    %p214 = scmp.ne.s32.totalorder %s200, %s201
    %p215 = scmp.eq.s32.totalorder %s20, 1
    %p216 = por %p214, %p215
    %p218 = scmp.ne.s32.totalorder %s201, %s217
    %p219 = scmp.eq.s32.totalorder %s20, 0
    %p220 = por %p218, %p219
    %p221 = scmp.le.s32.totalorder 1, %s14
    %p222 = scmp.lt.s32.totalorder %s14, 3
    %p223 = pnand %p221, %p222
    %p224 = pneg %p223
    // Predicated region
    $region9: #{shifted_pillars_np9_forward.1} parent=5 // pred_check
      _
    $region10: #{shifted_pillars_np9_forward.1} parent=5 // pred_check_branch
      %226 = sbr.rel (%p223) target = $region12
    $region11: #{shifted_pillars_np9_forward.1} parent=5 // pred_region
      %s227 = ssub.s32 %s14, 1
      // Predicated region
      $region13: #{shifted_pillars_np9_forward.1} parent=11 // pred_check
        %p228 = pneg %p61
      $region14: #{shifted_pillars_np9_forward.1} parent=11 // pred_check_branch
        %230 = sbr.rel (%p228) target = $region16
      $region15: #{shifted_pillars_np9_forward.1} parent=11 // pred_region
        _
      $region16: #{shifted_pillars_np9_forward.1} parent=11 // pred_fallthru
        _
      // Predicated region
      $region17: #{shifted_pillars_np9_forward.1} parent=11 // pred_check
        %p231 = pneg %p82
      $region18: #{shifted_pillars_np9_forward.1} parent=11 // pred_check_branch
        %233 = sbr.rel (%p231) target = $region20
      $region19: #{shifted_pillars_np9_forward.1} parent=11 // pred_region
        _
      $region20: #{shifted_pillars_np9_forward.1} parent=11 // pred_fallthru
        _
      // Predicated region
      $region21: #{shifted_pillars_np9_forward.1} parent=11 // pred_check
        %p234 = pneg %p103
      $region22: #{shifted_pillars_np9_forward.1} parent=11 // pred_check_branch
        %236 = sbr.rel (%p234) target = $region24
      $region23: #{shifted_pillars_np9_forward.1} parent=11 // pred_region
        _
      $region24: #{shifted_pillars_np9_forward.1} parent=11 // pred_fallthru
        _
      // Predicated region
      $region25: #{shifted_pillars_np9_forward.1} parent=11 // pred_check
        %p237 = pneg %p124
      $region26: #{shifted_pillars_np9_forward.1} parent=11 // pred_check_branch
        %239 = sbr.rel (%p237) target = $region28
      $region27: #{shifted_pillars_np9_forward.1} parent=11 // pred_region
        _
      $region28: #{shifted_pillars_np9_forward.1} parent=11 // pred_fallthru
        _
      // Predicated region
      $region29: #{shifted_pillars_np9_forward.1} parent=11 // pred_check
        %p240 = pneg %p145
      $region30: #{shifted_pillars_np9_forward.1} parent=11 // pred_check_branch
        %242 = sbr.rel (%p240) target = $region32
      $region31: #{shifted_pillars_np9_forward.1} parent=11 // pred_region
        _
      $region32: #{shifted_pillars_np9_forward.1} parent=11 // pred_fallthru
        _
      // Predicated region
      $region33: #{shifted_pillars_np9_forward.1} parent=11 // pred_check
        %p243 = pneg %p166
      $region34: #{shifted_pillars_np9_forward.1} parent=11 // pred_check_branch
        %245 = sbr.rel (%p243) target = $region36
      $region35: #{shifted_pillars_np9_forward.1} parent=11 // pred_region
        _
      $region36: #{shifted_pillars_np9_forward.1} parent=11 // pred_fallthru
        _
      // Predicated region
      $region37: #{shifted_pillars_np9_forward.1} parent=11 // pred_check
        %p246 = pneg %p187
      $region38: #{shifted_pillars_np9_forward.1} parent=11 // pred_check_branch
        %248 = sbr.rel (%p246) target = $region40
      $region39: #{shifted_pillars_np9_forward.1} parent=11 // pred_region
        _
      $region40: #{shifted_pillars_np9_forward.1} parent=11 // pred_fallthru
        _
    $region12: #{shifted_pillars_np9_forward.1} parent=5 // pred_fallthru
      _
    %p249 = scmp.lt.s32.totalorder %s14, 2
    // Predicated region
    $region41: #{shifted_pillars_np9_forward.1} parent=5 // pred_check
      %p250 = pneg %p249
    $region42: #{shifted_pillars_np9_forward.1} parent=5 // pred_check_branch
      %252 = sbr.rel (%p250) target = $region44
    $region43: #{shifted_pillars_np9_forward.1} parent=5 // pred_region
      // Predicated region
      $region45: #{shifted_pillars_np9_forward.1} parent=43 // pred_check
        %p253 = pneg %p34
      $region46: #{shifted_pillars_np9_forward.1} parent=43 // pred_check_branch
        %255 = sbr.rel (%p253) target = $region48
      $region47: #{shifted_pillars_np9_forward.1} parent=43 // pred_region
        %p256 = scmp.lt.s32.totalorder %s14, 1
        %s257 = scalar_select %p256, %s14, 1
        %s258 = smul.addr %s257, 10
        %s259 = smul.addr %s258, 8
        %s260 = scalar_lea.vmem %s0, %s259
      $region48: #{shifted_pillars_np9_forward.1} parent=43 // pred_fallthru
        _
    $region44: #{shifted_pillars_np9_forward.1} parent=5 // pred_fallthru
      _
    %p261 = scmp.le.s32.totalorder 1, %s14
    %p262 = scmp.lt.s32.totalorder %s14, 3
    %p263 = pnand %p261, %p262
    %p264 = pneg %p263
    // Predicated region
    $region49: #{shifted_pillars_np9_forward.1} parent=5 // pred_check
      _
    $region50: #{shifted_pillars_np9_forward.1} parent=5 // pred_check_branch
      %266 = sbr.rel (%p263) target = $region52
    $region51: #{shifted_pillars_np9_forward.1} parent=5 // pred_region
      %s267 = ssub.s32 %s14, 1
      %p268 = scmp.lt.s32.totalorder %s19, 1
      %s269 = scalar_select %p268, %s19, 1
      %s270 = smul.addr %s269, 10
      %s271 = smul.addr %s270, 8
      %s272 = scalar_lea.vmem %s0, %s271
      %p273 = pneg %p40
      %p274 = pneg %p37
      %p275 = pneg %p61
      %p276 = pneg %p58
      %p277 = pneg %p82
      %p278 = pneg %p79
      %p279 = pneg %p103
      %p280 = pneg %p100
      %p281 = pneg %p124
      %p282 = pneg %p121
      %p283 = pneg %p145
      %p284 = pneg %p142
      %p285 = pneg %p166
      %p286 = pneg %p163
      %p287 = pneg %p187
      %p288 = pneg %p184
      %p289 = pneg %p213
      %p290 = pneg %p210
      %p291 = scmp.lt.s32.totalorder %s19, 1
      %s292 = scalar_select %p291, %s19, 1
      %s293 = smul.addr %s292, 10
      %s294 = smul.addr %s293, 8
      %s295 = scalar_lea.vmem %s8, %s294
      %p296 = scmp.lt.s32.totalorder %s19, 1
      %s297 = scalar_select %p296, %s19, 1
      %s298 = smul.addr %s297, 10
      %s299 = smul.addr %s298, 8
      %s300 = scalar_lea.vmem %s0, %s299
      %p301 = scmp.lt.s32.totalorder %s19, 1
      %s302 = scalar_select %p301, %s19, 1
      %s303 = smul.addr %s302, 10
      %s304 = smul.addr %s303, 8
      %s305 = scalar_lea.vmem %s8, %s304
      %v307 = vld [vmem:[%s300] sm:$0xff]
      %v308 = vld [vmem:[%s300 + $0x8] sm:$0xff]
      %v309 = vld [vmem:[%s300 + $0x10] sm:$0xff]
      %v310 = vld [vmem:[%s300 + $0x18] sm:$0xff]
      %v311 = vld [vmem:[%s300 + $0x20] sm:$0xff]
      %v312 = vld [vmem:[%s300 + $0x28] sm:$0xff]
      %v313 = vld [vmem:[%s300 + $0x30] sm:$0xff]
      %v314 = vld [vmem:[%s300 + $0x38] sm:$0xff]
      %v315 = vld [vmem:[%s300 + $0x40] sm:$0xf]
      %v316 = vld [vmem:[%s300 + $0x48] sm:$0xf]
      %v317 = vld [vmem:[%s1] sm:$0xff]
      %v318 = vld [vmem:[%s1 + $0x8] sm:$0xff]
      %v319 = vld [vmem:[%s1 + $0x10] sm:$0xff]
      %v320 = vld [vmem:[%s1 + $0x18] sm:$0xff]
      %v321 = vld [vmem:[%s1 + $0x20] sm:$0xf]
      %323 = vset.pattern.permute.xlu0 0
      %324 = vperm.xlu0 %323, %v317
      %v325 = vpop.permute.xlu0 %324
      %328 = vset.pattern.permute.xlu0 0
      %329 = vperm.xlu0 %328, %v318
      %v330 = vpop.permute.xlu0 %329
      %333 = vset.pattern.permute.xlu0 0
      %334 = vperm.xlu0 %333, %v319
      %v335 = vpop.permute.xlu0 %334
      %338 = vset.pattern.permute.xlu0 0
      %339 = vperm.xlu0 %338, %v320
      %v340 = vpop.permute.xlu0 %339
      %343 = vset.pattern.permute.xlu0 0
      %344 = vperm.xlu0 %343, %v321
      %v345 = vpop.permute.xlu0 %344
      %v347 = vmul.f32 %v307, %v325
      %v348 = vmul.f32 %v308, %v325
      %v349 = vmul.f32 %v309, %v330
      %v350 = vmul.f32 %v310, %v330
      %v351 = vmul.f32 %v311, %v335
      %v352 = vmul.f32 %v312, %v335
      %v353 = vmul.f32 %v313, %v340
      %v354 = vmul.f32 %v314, %v340
      %v355 = vmul.f32 %v315, %v345
      %v356 = vmul.f32 %v316, %v345
      %v357 = vld [vmem:[%s2] sm:$0xff]
      %v358 = vld [vmem:[%s2 + $0x8] sm:$0xff]
      %v359 = vld [vmem:[%s2 + $0x10] sm:$0xff]
      %v360 = vld [vmem:[%s2 + $0x18] sm:$0xff]
      %v361 = vld [vmem:[%s2 + $0x20] sm:$0xf]
      %363 = vset.pattern.permute.xlu0 0
      %364 = vperm.xlu0 %363, %v357
      %v365 = vpop.permute.xlu0 %364
      %368 = vset.pattern.permute.xlu0 0
      %369 = vperm.xlu0 %368, %v358
      %v370 = vpop.permute.xlu0 %369
      %373 = vset.pattern.permute.xlu0 0
      %374 = vperm.xlu0 %373, %v359
      %v375 = vpop.permute.xlu0 %374
      %378 = vset.pattern.permute.xlu0 0
      %379 = vperm.xlu0 %378, %v360
      %v380 = vpop.permute.xlu0 %379
      %383 = vset.pattern.permute.xlu0 0
      %384 = vperm.xlu0 %383, %v361
      %v385 = vpop.permute.xlu0 %384
      %v387 = vadd.f32 %v347, %v365
      %v388 = vadd.f32 %v348, %v365
      %v389 = vadd.f32 %v349, %v370
      %v390 = vadd.f32 %v350, %v370
      %v391 = vadd.f32 %v351, %v375
      %v392 = vadd.f32 %v352, %v375
      %v393 = vadd.f32 %v353, %v380
      %v394 = vadd.f32 %v354, %v380
      %v395 = vadd.f32 %v355, %v385
      %v396 = vadd.f32 %v356, %v385
      %v397 = vmul.f32 %v387, 0.5
      %v398 = vmul.f32 %v388, 0.5
      %v399 = vmul.f32 %v389, 0.5
      %v400 = vmul.f32 %v390, 0.5
      %v401 = vmul.f32 %v391, 0.5
      %v402 = vmul.f32 %v392, 0.5
      %v403 = vmul.f32 %v393, 0.5
      %v404 = vmul.f32 %v394, 0.5
      %v405 = vmul.f32 %v395, 0.5
      %v406 = vmul.f32 %v396, 0.5
      %v407 = vmul.f32 %v387, 0.70710677
      %v408 = vmul.f32 %v388, 0.70710677
      %v409 = vmul.f32 %v389, 0.70710677
      %v410 = vmul.f32 %v390, 0.70710677
      %v411 = vmul.f32 %v391, 0.70710677
      %v412 = vmul.f32 %v392, 0.70710677
      %v413 = vmul.f32 %v393, 0.70710677
      %v414 = vmul.f32 %v394, 0.70710677
      %v415 = vmul.f32 %v395, 0.70710677
      %v416 = vmul.f32 %v396, 0.70710677
      %v417 = vand.u32 2147483647, %v407
      %v418 = vand.u32 2147483647, %v408
      %v419 = vand.u32 2147483647, %v409
      %v420 = vand.u32 2147483647, %v410
      %v421 = vand.u32 2147483647, %v411
      %v422 = vand.u32 2147483647, %v412
      %v423 = vand.u32 2147483647, %v413
      %v424 = vand.u32 2147483647, %v414
      %v425 = vand.u32 2147483647, %v415
      %v426 = vand.u32 2147483647, %v416
      %v427 = vmul.f32 %v417, 0.3275911
      %v428 = vmul.f32 %v418, 0.3275911
      %v429 = vmul.f32 %v419, 0.3275911
      %v430 = vmul.f32 %v420, 0.3275911
      %v431 = vmul.f32 %v421, 0.3275911
      %v432 = vmul.f32 %v422, 0.3275911
      %v433 = vmul.f32 %v423, 0.3275911
      %v434 = vmul.f32 %v424, 0.3275911
      %v435 = vmul.f32 %v425, 0.3275911
      %v436 = vmul.f32 %v426, 0.3275911
      %v437 = vadd.f32 %v427, 1.0
      %v438 = vadd.f32 %v428, 1.0
      %v439 = vadd.f32 %v429, 1.0
      %v440 = vadd.f32 %v430, 1.0
      %v441 = vadd.f32 %v431, 1.0
      %v442 = vadd.f32 %v432, 1.0
      %v443 = vadd.f32 %v433, 1.0
      %v444 = vadd.f32 %v434, 1.0
      %v445 = vadd.f32 %v435, 1.0
      %v446 = vadd.f32 %v436, 1.0
      %v447 = vrcp.pop %v437
      %v448 = vmul.f32 %v437, %v447
      %v449 = vsub.f32 1.0, %v448
      %v450 = vmul.f32 %v447, %v449
      %v451 = vadd.f32 %v447, %v450
      %vm452 = vweird.f32 %v437
      %vm453 = vweird.f32 %v447
      %vm454 = vmor %vm452, %vm453
      %v455 = vsel %vm454, %v447, %v451
      %v456 = vand.u32 2147483647, %v437
      %vm457 = vcmp.eq.f32.partialorder %v456, 8.507059e+37
      %v458 = vand.u32 %v437, 2147483648
      %v459 = vor.u32 1.1754944e-38, %v458
      %v460 = vsel %vm457, %v459, %v455
      %v461 = vmul.f32 1.0, %v460
      %v462 = vrcp.pop %v438
      %v463 = vmul.f32 %v438, %v462
      %v464 = vsub.f32 1.0, %v463
      %v465 = vmul.f32 %v462, %v464
      %v466 = vadd.f32 %v462, %v465
      %vm467 = vweird.f32 %v438
      %vm468 = vweird.f32 %v462
      %vm469 = vmor %vm467, %vm468
      %v470 = vsel %vm469, %v462, %v466
      %v471 = vand.u32 2147483647, %v438
      %vm472 = vcmp.eq.f32.partialorder %v471, 8.507059e+37
      %v473 = vand.u32 %v438, 2147483648
      %v474 = vor.u32 1.1754944e-38, %v473
      %v475 = vsel %vm472, %v474, %v470
      %v476 = vmul.f32 1.0, %v475
      %v477 = vrcp.pop %v439
      %v478 = vmul.f32 %v439, %v477
      %v479 = vsub.f32 1.0, %v478
      %v480 = vmul.f32 %v477, %v479
      %v481 = vadd.f32 %v477, %v480
      %vm482 = vweird.f32 %v439
      %vm483 = vweird.f32 %v477
      %vm484 = vmor %vm482, %vm483
      %v485 = vsel %vm484, %v477, %v481
      %v486 = vand.u32 2147483647, %v439
      %vm487 = vcmp.eq.f32.partialorder %v486, 8.507059e+37
      %v488 = vand.u32 %v439, 2147483648
      %v489 = vor.u32 1.1754944e-38, %v488
      %v490 = vsel %vm487, %v489, %v485
      %v491 = vmul.f32 1.0, %v490
      %v492 = vrcp.pop %v440
      %v493 = vmul.f32 %v440, %v492
      %v494 = vsub.f32 1.0, %v493
      %v495 = vmul.f32 %v492, %v494
      %v496 = vadd.f32 %v492, %v495
      %vm497 = vweird.f32 %v440
      %vm498 = vweird.f32 %v492
      %vm499 = vmor %vm497, %vm498
      %v500 = vsel %vm499, %v492, %v496
      %v501 = vand.u32 2147483647, %v440
      %vm502 = vcmp.eq.f32.partialorder %v501, 8.507059e+37
      %v503 = vand.u32 %v440, 2147483648
      %v504 = vor.u32 1.1754944e-38, %v503
      %v505 = vsel %vm502, %v504, %v500
      %v506 = vmul.f32 1.0, %v505
      %v507 = vrcp.pop %v441
      %v508 = vmul.f32 %v441, %v507
      %v509 = vsub.f32 1.0, %v508
      %v510 = vmul.f32 %v507, %v509
      %v511 = vadd.f32 %v507, %v510
      %vm512 = vweird.f32 %v441
      %vm513 = vweird.f32 %v507
      %vm514 = vmor %vm512, %vm513
      %v515 = vsel %vm514, %v507, %v511
      %v516 = vand.u32 2147483647, %v441
      %vm517 = vcmp.eq.f32.partialorder %v516, 8.507059e+37
      %v518 = vand.u32 %v441, 2147483648
      %v519 = vor.u32 1.1754944e-38, %v518
      %v520 = vsel %vm517, %v519, %v515
      %v521 = vmul.f32 1.0, %v520
      %v522 = vrcp.pop %v442
      %v523 = vmul.f32 %v442, %v522
      %v524 = vsub.f32 1.0, %v523
      %v525 = vmul.f32 %v522, %v524
      %v526 = vadd.f32 %v522, %v525
      %vm527 = vweird.f32 %v442
      %vm528 = vweird.f32 %v522
      %vm529 = vmor %vm527, %vm528
      %v530 = vsel %vm529, %v522, %v526
      %v531 = vand.u32 2147483647, %v442
      %vm532 = vcmp.eq.f32.partialorder %v531, 8.507059e+37
      %v533 = vand.u32 %v442, 2147483648
      %v534 = vor.u32 1.1754944e-38, %v533
      %v535 = vsel %vm532, %v534, %v530
      %v536 = vmul.f32 1.0, %v535
      %v537 = vrcp.pop %v443
      %v538 = vmul.f32 %v443, %v537
      %v539 = vsub.f32 1.0, %v538
      %v540 = vmul.f32 %v537, %v539
      %v541 = vadd.f32 %v537, %v540
      %vm542 = vweird.f32 %v443
      %vm543 = vweird.f32 %v537
      %vm544 = vmor %vm542, %vm543
      %v545 = vsel %vm544, %v537, %v541
      %v546 = vand.u32 2147483647, %v443
      %vm547 = vcmp.eq.f32.partialorder %v546, 8.507059e+37
      %v548 = vand.u32 %v443, 2147483648
      %v549 = vor.u32 1.1754944e-38, %v548
      %v550 = vsel %vm547, %v549, %v545
      %v551 = vmul.f32 1.0, %v550
      %v552 = vrcp.pop %v444
      %v553 = vmul.f32 %v444, %v552
      %v554 = vsub.f32 1.0, %v553
      %v555 = vmul.f32 %v552, %v554
      %v556 = vadd.f32 %v552, %v555
      %vm557 = vweird.f32 %v444
      %vm558 = vweird.f32 %v552
      %vm559 = vmor %vm557, %vm558
      %v560 = vsel %vm559, %v552, %v556
      %v561 = vand.u32 2147483647, %v444
      %vm562 = vcmp.eq.f32.partialorder %v561, 8.507059e+37
      %v563 = vand.u32 %v444, 2147483648
      %v564 = vor.u32 1.1754944e-38, %v563
      %v565 = vsel %vm562, %v564, %v560
      %v566 = vmul.f32 1.0, %v565
      %v567 = vrcp.pop %v445
      %v568 = vmul.f32 %v445, %v567
      %v569 = vsub.f32 1.0, %v568
      %v570 = vmul.f32 %v567, %v569
      %v571 = vadd.f32 %v567, %v570
      %vm572 = vweird.f32 %v445
      %vm573 = vweird.f32 %v567
      %vm574 = vmor %vm572, %vm573
      %v575 = vsel %vm574, %v567, %v571
      %v576 = vand.u32 2147483647, %v445
      %vm577 = vcmp.eq.f32.partialorder %v576, 8.507059e+37
      %v578 = vand.u32 %v445, 2147483648
      %v579 = vor.u32 1.1754944e-38, %v578
      %v580 = vsel %vm577, %v579, %v575
      %v581 = vmul.f32 1.0, %v580
      %v582 = vrcp.pop %v446
      %v583 = vmul.f32 %v446, %v582
      %v584 = vsub.f32 1.0, %v583
      %v585 = vmul.f32 %v582, %v584
      %v586 = vadd.f32 %v582, %v585
      %vm587 = vweird.f32 %v446
      %vm588 = vweird.f32 %v582
      %vm589 = vmor %vm587, %vm588
      %v590 = vsel %vm589, %v582, %v586
      %v591 = vand.u32 2147483647, %v446
      %vm592 = vcmp.eq.f32.partialorder %v591, 8.507059e+37
      %v593 = vand.u32 %v446, 2147483648
      %v594 = vor.u32 1.1754944e-38, %v593
      %v595 = vsel %vm592, %v594, %v590
      %v596 = vmul.f32 1.0, %v595
      %v597 = vmul.f32 %v461, 1.0614054
      %v598 = vmul.f32 %v476, 1.0614054
      %v599 = vmul.f32 %v491, 1.0614054
      %v600 = vmul.f32 %v506, 1.0614054
      %v601 = vmul.f32 %v521, 1.0614054
      %v602 = vmul.f32 %v536, 1.0614054
      %v603 = vmul.f32 %v551, 1.0614054
      %v604 = vmul.f32 %v566, 1.0614054
      %v605 = vmul.f32 %v581, 1.0614054
      %v606 = vmul.f32 %v596, 1.0614054
      %v607 = vadd.f32 %v597, -1.4531521
      %v608 = vadd.f32 %v598, -1.4531521
      %v609 = vadd.f32 %v599, -1.4531521
      %v610 = vadd.f32 %v600, -1.4531521
      %v611 = vadd.f32 %v601, -1.4531521
      %v612 = vadd.f32 %v602, -1.4531521
      %v613 = vadd.f32 %v603, -1.4531521
      %v614 = vadd.f32 %v604, -1.4531521
      %v615 = vadd.f32 %v605, -1.4531521
      %v616 = vadd.f32 %v606, -1.4531521
      %v617 = vmul.f32 %v607, %v461
      %v618 = vmul.f32 %v608, %v476
      %v619 = vmul.f32 %v609, %v491
      %v620 = vmul.f32 %v610, %v506
      %v621 = vmul.f32 %v611, %v521
      %v622 = vmul.f32 %v612, %v536
      %v623 = vmul.f32 %v613, %v551
      %v624 = vmul.f32 %v614, %v566
      %v625 = vmul.f32 %v615, %v581
      %v626 = vmul.f32 %v616, %v596
      %v627 = vadd.f32 %v617, 1.4214138
      %v628 = vadd.f32 %v618, 1.4214138
      %v629 = vadd.f32 %v619, 1.4214138
      %v630 = vadd.f32 %v620, 1.4214138
      %v631 = vadd.f32 %v621, 1.4214138
      %v632 = vadd.f32 %v622, 1.4214138
      %v633 = vadd.f32 %v623, 1.4214138
      %v634 = vadd.f32 %v624, 1.4214138
      %v635 = vadd.f32 %v625, 1.4214138
      %v636 = vadd.f32 %v626, 1.4214138
      %v637 = vmul.f32 %v627, %v461
      %v638 = vmul.f32 %v628, %v476
      %v639 = vmul.f32 %v629, %v491
      %v640 = vmul.f32 %v630, %v506
      %v641 = vmul.f32 %v631, %v521
      %v642 = vmul.f32 %v632, %v536
      %v643 = vmul.f32 %v633, %v551
      %v644 = vmul.f32 %v634, %v566
      %v645 = vmul.f32 %v635, %v581
      %v646 = vmul.f32 %v636, %v596
      %v647 = vadd.f32 %v637, -0.28449672
      %v648 = vadd.f32 %v638, -0.28449672
      %v649 = vadd.f32 %v639, -0.28449672
      %v650 = vadd.f32 %v640, -0.28449672
      %v651 = vadd.f32 %v641, -0.28449672
      %v652 = vadd.f32 %v642, -0.28449672
      %v653 = vadd.f32 %v643, -0.28449672
      %v654 = vadd.f32 %v644, -0.28449672
      %v655 = vadd.f32 %v645, -0.28449672
      %v656 = vadd.f32 %v646, -0.28449672
      %v657 = vmul.f32 %v647, %v461
      %v658 = vmul.f32 %v648, %v476
      %v659 = vmul.f32 %v649, %v491
      %v660 = vmul.f32 %v650, %v506
      %v661 = vmul.f32 %v651, %v521
      %v662 = vmul.f32 %v652, %v536
      %v663 = vmul.f32 %v653, %v551
      %v664 = vmul.f32 %v654, %v566
      %v665 = vmul.f32 %v655, %v581
      %v666 = vmul.f32 %v656, %v596
      %v667 = vadd.f32 %v657, 0.2548296
      %v668 = vadd.f32 %v658, 0.2548296
      %v669 = vadd.f32 %v659, 0.2548296
      %v670 = vadd.f32 %v660, 0.2548296
      %v671 = vadd.f32 %v661, 0.2548296
      %v672 = vadd.f32 %v662, 0.2548296
      %v673 = vadd.f32 %v663, 0.2548296
      %v674 = vadd.f32 %v664, 0.2548296
      %v675 = vadd.f32 %v665, 0.2548296
      %v676 = vadd.f32 %v666, 0.2548296
      %v677 = vmul.f32 %v667, %v461
      %v678 = vmul.f32 %v668, %v476
      %v679 = vmul.f32 %v669, %v491
      %v680 = vmul.f32 %v670, %v506
      %v681 = vmul.f32 %v671, %v521
      %v682 = vmul.f32 %v672, %v536
      %v683 = vmul.f32 %v673, %v551
      %v684 = vmul.f32 %v674, %v566
      %v685 = vmul.f32 %v675, %v581
      %v686 = vmul.f32 %v676, %v596
      %v687 = vsub.f32 0.0, %v417
      %v688 = vsub.f32 0.0, %v418
      %v689 = vsub.f32 0.0, %v419
      %v690 = vsub.f32 0.0, %v420
      %v691 = vsub.f32 0.0, %v421
      %v692 = vsub.f32 0.0, %v422
      %v693 = vsub.f32 0.0, %v423
      %v694 = vsub.f32 0.0, %v424
      %v695 = vsub.f32 0.0, %v425
      %v696 = vsub.f32 0.0, %v426
      %v697 = vmul.f32 %v687, %v417
      %v698 = vmul.f32 %v688, %v418
      %v699 = vmul.f32 %v689, %v419
      %v700 = vmul.f32 %v690, %v420
      %v701 = vmul.f32 %v691, %v421
      %v702 = vmul.f32 %v692, %v422
      %v703 = vmul.f32 %v693, %v423
      %v704 = vmul.f32 %v694, %v424
      %v705 = vmul.f32 %v695, %v425
      %v706 = vmul.f32 %v696, %v426
      %v707 = vmul.f32 %v697, 1.442695
      %v708 = vpow.pop %v707
      %v709 = vmul.f32 %v698, 1.442695
      %v710 = vpow.pop %v709
      %v711 = vmul.f32 %v699, 1.442695
      %v712 = vpow.pop %v711
      %v713 = vmul.f32 %v700, 1.442695
      %v714 = vpow.pop %v713
      %v715 = vmul.f32 %v701, 1.442695
      %v716 = vpow.pop %v715
      %v717 = vmul.f32 %v702, 1.442695
      %v718 = vpow.pop %v717
      %v719 = vmul.f32 %v703, 1.442695
      %v720 = vpow.pop %v719
      %v721 = vmul.f32 %v704, 1.442695
      %v722 = vpow.pop %v721
      %v723 = vmul.f32 %v705, 1.442695
      %v724 = vpow.pop %v723
      %v725 = vmul.f32 %v706, 1.442695
      %v726 = vpow.pop %v725
      %v727 = vmul.f32 %v677, %v708
      %v728 = vmul.f32 %v678, %v710
      %v729 = vmul.f32 %v679, %v712
      %v730 = vmul.f32 %v680, %v714
      %v731 = vmul.f32 %v681, %v716
      %v732 = vmul.f32 %v682, %v718
      %v733 = vmul.f32 %v683, %v720
      %v734 = vmul.f32 %v684, %v722
      %v735 = vmul.f32 %v685, %v724
      %v736 = vmul.f32 %v686, %v726
      %v737 = vsub.f32 1.0, %v727
      %v738 = vsub.f32 1.0, %v728
      %v739 = vsub.f32 1.0, %v729
      %v740 = vsub.f32 1.0, %v730
      %v741 = vsub.f32 1.0, %v731
      %v742 = vsub.f32 1.0, %v732
      %v743 = vsub.f32 1.0, %v733
      %v744 = vsub.f32 1.0, %v734
      %v745 = vsub.f32 1.0, %v735
      %v746 = vsub.f32 1.0, %v736
      %vm747 = vcmp.lt.f32.partialorder %v407, 0.0
      %vm748 = vcmp.lt.f32.partialorder %v408, 0.0
      %vm749 = vcmp.lt.f32.partialorder %v409, 0.0
      %vm750 = vcmp.lt.f32.partialorder %v410, 0.0
      %vm751 = vcmp.lt.f32.partialorder %v411, 0.0
      %vm752 = vcmp.lt.f32.partialorder %v412, 0.0
      %vm753 = vcmp.lt.f32.partialorder %v413, 0.0
      %vm754 = vcmp.lt.f32.partialorder %v414, 0.0
      %vm755 = vcmp.lt.f32.partialorder %v415, 0.0
      %vm756 = vcmp.lt.f32.partialorder %v416, 0.0
      %v757 = vsub.f32 0.0, %v737
      %v758 = vsub.f32 0.0, %v738
      %v759 = vsub.f32 0.0, %v739
      %v760 = vsub.f32 0.0, %v740
      %v761 = vsub.f32 0.0, %v741
      %v762 = vsub.f32 0.0, %v742
      %v763 = vsub.f32 0.0, %v743
      %v764 = vsub.f32 0.0, %v744
      %v765 = vsub.f32 0.0, %v745
      %v766 = vsub.f32 0.0, %v746
      %v767 = vsel %vm747, %v757, %v737
      %v768 = vsel %vm748, %v758, %v738
      %v769 = vsel %vm749, %v759, %v739
      %v770 = vsel %vm750, %v760, %v740
      %v771 = vsel %vm751, %v761, %v741
      %v772 = vsel %vm752, %v762, %v742
      %v773 = vsel %vm753, %v763, %v743
      %v774 = vsel %vm754, %v764, %v744
      %v775 = vsel %vm755, %v765, %v745
      %v776 = vsel %vm756, %v766, %v746
      %v777 = vadd.f32 %v767, 1.0
      %v778 = vadd.f32 %v768, 1.0
      %v779 = vadd.f32 %v769, 1.0
      %v780 = vadd.f32 %v770, 1.0
      %v781 = vadd.f32 %v771, 1.0
      %v782 = vadd.f32 %v772, 1.0
      %v783 = vadd.f32 %v773, 1.0
      %v784 = vadd.f32 %v774, 1.0
      %v785 = vadd.f32 %v775, 1.0
      %v786 = vadd.f32 %v776, 1.0
      %v787 = vmul.f32 %v397, %v777
      %v788 = vmul.f32 %v398, %v778
      %v789 = vmul.f32 %v399, %v779
      %v790 = vmul.f32 %v400, %v780
      %v791 = vmul.f32 %v401, %v781
      %v792 = vmul.f32 %v402, %v782
      %v793 = vmul.f32 %v403, %v783
      %v794 = vmul.f32 %v404, %v784
      %v795 = vmul.f32 %v405, %v785
      %v796 = vmul.f32 %v406, %v786
      %v797 = vld [vmem:[%s3] sm:$0xf]
      %v798 = vld [vmem:[%s3 + $0x4] sm:$0xf]
      %v799 = vld [vmem:[%s3 + $0x8] sm:$0xf]
      %v800 = vld [vmem:[%s3 + $0xc] sm:$0xf]
      %v801 = vld [vmem:[%s3 + $0x10] sm:$0x3]
      %v802 = vpack.c.bf16 %v789, %v787
      %v803 = vpack.c.bf16 %v790, %v788
      %v804 = vpack.c.bf16 %v793, %v791
      %v805 = vpack.c.bf16 %v794, %v792
      %v806 = vpack.c.bf16 %v795, %v795
      %v807 = vpack.c.bf16 %v796, %v796
      %v808 = vld [vmem:[%s4] sm:$0xff]
      %v809 = vld [vmem:[%s4 + $0x8] sm:$0xff]
      %v810 = vld [vmem:[%s4 + $0x10] sm:$0xff]
      %v811 = vld [vmem:[%s4 + $0x18] sm:$0xff]
      %v812 = vld [vmem:[%s4 + $0x20] sm:$0xf]
      %814 = vset.pattern.permute.xlu0 0
      %815 = vperm.xlu0 %814, %v808
      %v816 = vpop.permute.xlu0 %815
      %819 = vset.pattern.permute.xlu0 0
      %820 = vperm.xlu0 %819, %v809
      %v821 = vpop.permute.xlu0 %820
      %824 = vset.pattern.permute.xlu0 0
      %825 = vperm.xlu0 %824, %v810
      %v826 = vpop.permute.xlu0 %825
      %829 = vset.pattern.permute.xlu0 0
      %830 = vperm.xlu0 %829, %v811
      %v831 = vpop.permute.xlu0 %830
      %834 = vset.pattern.permute.xlu0 0
      %835 = vperm.xlu0 %834, %v812
      %v836 = vpop.permute.xlu0 %835
      %v843 = vunpack.c.l.b16 %v797
      %v844 = vunpack.c.l.b16 %v798
      %v845 = vunpack.c.l.b16 %v799
      %v846 = vunpack.c.l.b16 %v800
      %v847 = vunpack.c.l.b16 %v801
      %v848 = vpack.c.b16 %v844, %v843
      %v849 = vpack.c.b16 %v846, %v845
      %v850 = vpack.c.b16 %v847, %v847
      %vm851 = vcmask 293888
      %v853 = vsel %vm851, %v848, 0
      %v856 = vsel %vm851, %v849, 0
      %v859 = vsel %vm851, %v850, 0
      %vm861 = vcmask 1041408
      %v863 = vsel %vm861, %v806, 0
      %v866 = vsel %vm861, %v807, 0
      %868 = vmatpush.bf16.msra.mxu0 0
      %869 = vmatpush.bf16.msra.mxu0 0
      %870 = vmatpush.bf16.msra.mxu0 0
      %871 = vmatpush.bf16.msra.mxu0 0
      %872 = vmatpush.bf16.msra.mxu0 0
      %873 = vmatpush.bf16.msra.mxu0 %v863
      %874 = vmatpush.bf16.msra.mxu0 %v804
      %875 = vmatpush.bf16.msra.mxu0 %v802
      %876 = vmatmul.bf16.gmra.mxu0 %v853
      %v877 = vpop.f32.mrf.mxu0
      %v878 = vadd.f32 %v816, %v877
      %v879 = vpop.f32.mrf.mxu0
      %v880 = vadd.f32 %v821, %v879
      %881 = vmatmul.bf16.gmra.mxu0 %v856
      %v882 = vpop.f32.mrf.mxu0
      %v883 = vadd.f32 %v826, %v882
      %v884 = vpop.f32.mrf.mxu0
      %v885 = vadd.f32 %v831, %v884
      %886 = vmatmul.bf16.gmra.mxu0 %v859
      %v887 = vpop.f32.mrf.mxu0
      %v888 = vadd.f32 %v836, %v887
      %v889 = vpop.f32.mrf.mxu0
      %890 = vdwg.mxu0
      %891 = vmatpush.bf16.msra.mxu0 0
      %892 = vmatpush.bf16.msra.mxu0 0
      %893 = vmatpush.bf16.msra.mxu0 0
      %894 = vmatpush.bf16.msra.mxu0 0
      %895 = vmatpush.bf16.msra.mxu0 0
      %896 = vmatpush.bf16.msra.mxu0 %v866
      %897 = vmatpush.bf16.msra.mxu0 %v805
      %898 = vmatpush.bf16.msra.mxu0 %v803
      %899 = vmatmul.bf16.gmra.mxu0 %v853
      %v900 = vpop.f32.mrf.mxu0
      %v901 = vadd.f32 %v816, %v900
      %v902 = vpop.f32.mrf.mxu0
      %v903 = vadd.f32 %v821, %v902
      %904 = vmatmul.bf16.gmra.mxu0 %v856
      %v905 = vpop.f32.mrf.mxu0
      %v906 = vadd.f32 %v826, %v905
      %v907 = vpop.f32.mrf.mxu0
      %v908 = vadd.f32 %v831, %v907
      %909 = vmatmul.bf16.gmra.mxu0 %v859
      %v910 = vpop.f32.mrf.mxu0
      %v911 = vadd.f32 %v836, %v910
      %v912 = vpop.f32.mrf.mxu0
      %913 = vdwg.mxu0
      %924 = vrot.lane.b32.xlu0 %v878, 34
      %v925 = vpop.permute.xlu0 %924
      %926 = vrot.lane.b32.xlu0 %v901, 34
      %v927 = vpop.permute.xlu0 %926
      %928 = vrot.lane.b32.xlu0 %v880, 34
      %v929 = vpop.permute.xlu0 %928
      %930 = vrot.lane.b32.xlu0 %v903, 34
      %v931 = vpop.permute.xlu0 %930
      %932 = vrot.lane.b32.xlu0 %v883, 34
      %v933 = vpop.permute.xlu0 %932
      %934 = vrot.lane.b32.xlu0 %v906, 34
      %v935 = vpop.permute.xlu0 %934
      %936 = vrot.lane.b32.xlu0 %v885, 34
      %v937 = vpop.permute.xlu0 %936
      %938 = vrot.lane.b32.xlu0 %v908, 34
      %v939 = vpop.permute.xlu0 %938
      %940 = vrot.lane.b32.xlu0 %v888, 34
      %v941 = vpop.permute.xlu0 %940
      %942 = vrot.lane.b32.xlu0 %v911, 34
      %v943 = vpop.permute.xlu0 %942
      %vm944 = vcmask 277504
      %v945 = vsel %vm944, %v925, %v927
      %v946 = vsel %vm944, %v929, %v931
      %v947 = vsel %vm944, %v933, %v935
      %v948 = vsel %vm944, %v937, %v939
      %v949 = vsel %vm944, %v941, %v943
      %v965 = vsel %vm944, 0.0, %v925
      %v966 = vsel %vm944, 0.0, %v929
      %v967 = vsel %vm944, 0.0, %v933
      %v968 = vsel %vm944, 0.0, %v937
      %v969 = vsel %vm944, 0.0, %v941
      %v970 = vsel %vm944, %v927, 0.0
      %v971 = vsel %vm944, %v931, 0.0
      %v972 = vsel %vm944, %v935, 0.0
      %v973 = vsel %vm944, %v939, 0.0
      %v974 = vsel %vm944, %v943, 0.0
      %s975 = scalar_lea.vmem %s7, 6
      %v976 = vld [vmem:[%s975] sm:$0x3]
      %v978 = vperm.slane %v976, 0
      %v979 = vperm.slane %v976, 1
      %980 = vrot.lane.b32.xlu0 %v978, 32
      %v981 = vpop.permute.xlu0 %980
      %982 = vrot.lane.b32.xlu0 %v979, 32
      %v983 = vpop.permute.xlu0 %982
      %vm984 = vcmask 261120
      %v985 = vsel %vm984, %v981, %v983
      %v989 = vmul.f32 %v966, %v981
      %v990 = vmul.f32 %v946, %v985
      %v991 = vmul.f32 %v971, %v983
      %s992 = scalar_lea.vmem %s7, 8
      %v993 = vld [vmem:[%s992] sm:$0x3]
      %v995 = vperm.slane %v993, 0
      %v996 = vperm.slane %v993, 1
      %997 = vrot.lane.b32.xlu0 %v995, 35
      %v998 = vpop.permute.xlu0 %997
      %999 = vrot.lane.b32.xlu0 %v996, 35
      %v1000 = vpop.permute.xlu0 %999
      %vm1001 = vcmask 285696
      %v1002 = vsel %vm1001, %v998, %v1000
      %v1006 = vmul.f32 %v967, %v998
      %v1007 = vmul.f32 %v947, %v1002
      %v1008 = vmul.f32 %v972, %v1000
      %s1009 = scalar_lea.vmem %s7, 10
      %v1010 = vld [vmem:[%s1009] sm:$0x3]
      %v1012 = vperm.slane %v1010, 0
      %v1013 = vperm.slane %v1010, 1
      %1014 = vrot.lane.b32.xlu0 %v1012, 48
      %v1015 = vpop.permute.xlu0 %1014
      %1016 = vrot.lane.b32.xlu0 %v1013, 48
      %v1017 = vpop.permute.xlu0 %1016
      %vm1018 = vcmask 392192
      %v1019 = vsel %vm1018, %v1015, %v1017
      %v1023 = vmul.f32 %v967, %v1015
      %v1024 = vmul.f32 %v947, %v1019
      %v1025 = vmul.f32 %v972, %v1017
      %s1026 = scalar_lea.vmem %s7, 12
      %v1027 = vld [vmem:[%s1026] sm:$0x3]
      %v1029 = vperm.slane %v1027, 0
      %v1030 = vperm.slane %v1027, 1
      %1031 = vrot.lane.b32.xlu0 %v1029, 51
      %v1032 = vpop.permute.xlu0 %1031
      %1033 = vrot.lane.b32.xlu0 %v1030, 51
      %v1034 = vpop.permute.xlu0 %1033
      %vm1035 = vcmask 416768
      %v1036 = vsel %vm1035, %v1032, %v1034
      %v1040 = vmul.f32 %v968, %v1032
      %v1041 = vmul.f32 %v948, %v1036
      %v1042 = vmul.f32 %v973, %v1034
      %s1043 = scalar_lea.vmem %s7, 14
      %v1044 = vld [vmem:[%s1043] sm:$0x3]
      %v1046 = vperm.slane %v1044, 0
      %v1047 = vperm.slane %v1044, 1
      %v1050 = vmul.f32 %v968, %v1046
      %v1051 = vmul.f32 %v948, %v1047
      %s1052 = scalar_lea.vmem %s7, 16
      %v1053 = vld [vmem:[%s1052] sm:$0x3]
      %v1055 = vperm.slane %v1053, 0
      %v1056 = vperm.slane %v1053, 1
      %1057 = vrot.lane.b32.xlu0 %v1055, 3
      %v1058 = vpop.permute.xlu0 %1057
      %1059 = vrot.lane.b32.xlu0 %v1056, 3
      %v1060 = vpop.permute.xlu0 %1059
      %vm1061 = vcmask 23552
      %v1062 = vsel %vm1061, %v1058, %v1060
      %v1066 = vmul.f32 %v969, %v1058
      %v1067 = vmul.f32 %v949, %v1062
      %v1068 = vmul.f32 %v974, %v1060
      %1071 = vrot.lane.b32.xlu0 %v966, 16
      %v1072 = vpop.permute.xlu0 %1071
      %1073 = vrot.lane.b32.xlu0 %v946, 16
      %v1074 = vpop.permute.xlu0 %1073
      %1075 = vrot.lane.b32.xlu0 %v971, 16
      %v1076 = vpop.permute.xlu0 %1075
      %vm1077 = vcmask 130048
      %v1078 = vsel %vm1077, %v1072, %v1074
      %v1079 = vsel %vm1077, %v1074, %v1076
      %1086 = vrot.lane.b32.xlu0 %v989, 2
      %v1087 = vpop.permute.xlu0 %1086
      %1088 = vrot.lane.b32.xlu0 %v990, 2
      %v1089 = vpop.permute.xlu0 %1088
      %1090 = vrot.lane.b32.xlu0 %v991, 2
      %v1091 = vpop.permute.xlu0 %1090
      %vm1092 = vcmask 15360
      %v1093 = vsel %vm1092, %v1087, %v1089
      %v1094 = vsel %vm1092, %v1089, %v1091
      %1101 = vrot.lane.b32.xlu0 %v1006, 127
      %v1102 = vpop.permute.xlu0 %1101
      %1103 = vrot.lane.b32.xlu0 %v1007, 127
      %v1104 = vpop.permute.xlu0 %1103
      %1105 = vrot.lane.b32.xlu0 %v1008, 127
      %v1106 = vpop.permute.xlu0 %1105
      %vm1107 = vcmask 1039360
      %v1108 = vsel %vm1107, %v1102, %v1104
      %v1109 = vsel %vm1107, %v1104, %v1106
      %1116 = vrot.lane.b32.xlu0 %v1023, 114
      %v1117 = vpop.permute.xlu0 %1116
      %1118 = vrot.lane.b32.xlu0 %v1024, 114
      %v1119 = vpop.permute.xlu0 %1118
      %1120 = vrot.lane.b32.xlu0 %v1025, 114
      %v1121 = vpop.permute.xlu0 %1120
      %vm1122 = vcmask 932864
      %v1123 = vsel %vm1122, %v1117, %v1119
      %v1124 = vsel %vm1122, %v1119, %v1121
      %1131 = vrot.lane.b32.xlu0 %v1040, 111
      %v1132 = vpop.permute.xlu0 %1131
      %1133 = vrot.lane.b32.xlu0 %v1041, 111
      %v1134 = vpop.permute.xlu0 %1133
      %1135 = vrot.lane.b32.xlu0 %v1042, 111
      %v1136 = vpop.permute.xlu0 %1135
      %vm1137 = vcmask 908288
      %v1138 = vsel %vm1137, %v1132, %v1134
      %v1139 = vsel %vm1137, %v1134, %v1136
      %1145 = vrot.lane.b32.xlu0 %v1050, 34
      %v1146 = vpop.permute.xlu0 %1145
      %1147 = vrot.lane.b32.xlu0 %v1051, 34
      %v1148 = vpop.permute.xlu0 %1147
      %v1149 = vsel %vm944, %v1146, %v1148
      %1156 = vrot.lane.b32.xlu0 %v1066, 31
      %v1157 = vpop.permute.xlu0 %1156
      %1158 = vrot.lane.b32.xlu0 %v1067, 31
      %v1159 = vpop.permute.xlu0 %1158
      %1160 = vrot.lane.b32.xlu0 %v1068, 31
      %v1161 = vpop.permute.xlu0 %1160
      %vm1162 = vcmask 252928
      %v1163 = vsel %vm1162, %v1157, %v1159
      %v1164 = vsel %vm1162, %v1159, %v1161
      %vm1168 = vcmask 1043456
      %v1169 = vsel %vm1168, %v1072, %v1087
      %v1170 = vsel %vm1168, %v1078, %v1093
      %v1171 = vsel %vm1168, %v1079, %v1094
      %v1172 = vsel %vm1168, %v1108, %v1123
      %v1173 = vsel %vm1168, %v1109, %v1124
      %v1174 = vsel %vm1168, %v1106, %v1121
      %v1175 = vsel %vm1168, %v1138, %v1146
      %v1176 = vsel %vm1168, %v1139, %v1149
      %v1177 = vsel %vm1168, %v1136, %v1148
      %v1178 = vpack.c.bf16 %v1169, %v965
      %v1179 = vpack.c.bf16 %v1170, %v945
      %v1180 = vpack.c.bf16 %v1171, %v970
      %v1181 = vpack.c.bf16 %v1175, %v1172
      %v1182 = vpack.c.bf16 %v1176, %v1173
      %v1183 = vpack.c.bf16 %v1177, %v1174
      %v1184 = vpack.c.bf16 %v1157, %v1157
      %v1185 = vpack.c.bf16 %v1163, %v1163
      %v1186 = vpack.c.bf16 %v1164, %v1164
      %v1187 = vld [vmem:[%s5] sm:$0xf]
      %v1188 = vld [vmem:[%s5 + $0x4] sm:$0xf]
      %v1189 = vld [vmem:[%s5 + $0x8] sm:$0xf]
      %v1190 = vld [vmem:[%s5 + $0xc] sm:$0xf]
      %v1191 = vld [vmem:[%s5 + $0x10] sm:$0x3]
      %v1192 = vld [vmem:[%s6] sm:$0xff]
      %v1193 = vld [vmem:[%s6 + $0x8] sm:$0xff]
      %v1194 = vld [vmem:[%s6 + $0x10] sm:$0xff]
      %v1195 = vld [vmem:[%s6 + $0x18] sm:$0xff]
      %v1196 = vld [vmem:[%s6 + $0x20] sm:$0xf]
      %1198 = vset.pattern.permute.xlu0 0
      %1199 = vperm.xlu0 %1198, %v1192
      %v1200 = vpop.permute.xlu0 %1199
      %1203 = vset.pattern.permute.xlu0 0
      %1204 = vperm.xlu0 %1203, %v1193
      %v1205 = vpop.permute.xlu0 %1204
      %1208 = vset.pattern.permute.xlu0 0
      %1209 = vperm.xlu0 %1208, %v1194
      %v1210 = vpop.permute.xlu0 %1209
      %1213 = vset.pattern.permute.xlu0 0
      %1214 = vperm.xlu0 %1213, %v1195
      %v1215 = vpop.permute.xlu0 %1214
      %1218 = vset.pattern.permute.xlu0 0
      %1219 = vperm.xlu0 %1218, %v1196
      %v1220 = vpop.permute.xlu0 %1219
      %v1227 = vunpack.c.l.b16 %v1187
      %v1228 = vunpack.c.l.b16 %v1188
      %v1229 = vunpack.c.l.b16 %v1189
      %v1230 = vunpack.c.l.b16 %v1190
      %v1231 = vunpack.c.l.b16 %v1191
      %v1232 = vpack.c.b16 %v1228, %v1227
      %v1233 = vpack.c.b16 %v1230, %v1229
      %v1234 = vpack.c.b16 %v1231, %v1231
      %1244 = vrot.lane.b32.xlu0 %v1178, 94
      %v1245 = vpop.permute.xlu0 %1244
      %1246 = vrot.lane.b32.xlu0 %v1179, 94
      %v1247 = vpop.permute.xlu0 %1246
      %1248 = vrot.lane.b32.xlu0 %v1180, 94
      %v1249 = vpop.permute.xlu0 %1248
      %1250 = vrot.lane.b32.xlu0 %v1181, 94
      %v1251 = vpop.permute.xlu0 %1250
      %1252 = vrot.lane.b32.xlu0 %v1182, 94
      %v1253 = vpop.permute.xlu0 %1252
      %1254 = vrot.lane.b32.xlu0 %v1183, 94
      %v1255 = vpop.permute.xlu0 %1254
      %1256 = vrot.lane.b32.xlu0 %v1184, 94
      %v1257 = vpop.permute.xlu0 %1256
      %1258 = vrot.lane.b32.xlu0 %v1185, 94
      %v1259 = vpop.permute.xlu0 %1258
      %1260 = vrot.lane.b32.xlu0 %v1186, 94
      %v1261 = vpop.permute.xlu0 %1260
      %vm1262 = vcmask 769024
      %v1263 = vsel %vm1262, %v1245, %v1247
      %v1264 = vsel %vm1262, %v1247, %v1249
      %v1265 = vsel %vm1262, %v1251, %v1253
      %v1266 = vsel %vm1262, %v1253, %v1255
      %v1267 = vsel %vm1262, %v1257, %v1259
      %v1268 = vsel %vm1262, %v1259, %v1261
      %v1274 = vsel %vm851, %v1232, 0
      %v1277 = vsel %vm851, %v1233, 0
      %v1280 = vsel %vm851, %v1234, 0
      %v1283 = vsel %vm861, %v1267, 0
      %v1286 = vsel %vm861, %v1268, 0
      %1288 = vmatpush.bf16.msra.mxu0 0
      %1289 = vmatpush.bf16.msra.mxu0 0
      %1290 = vmatpush.bf16.msra.mxu0 0
      %1291 = vmatpush.bf16.msra.mxu0 0
      %1292 = vmatpush.bf16.msra.mxu0 0
      %1293 = vmatpush.bf16.msra.mxu0 %v1283
      %1294 = vmatpush.bf16.msra.mxu0 %v1265
      %1295 = vmatpush.bf16.msra.mxu0 %v1263
      %1296 = vmatmul.bf16.gmra.mxu0 %v1274
      %v1297 = vpop.f32.mrf.mxu0
      %v1298 = vadd.f32 %v1200, %v1297
      %v1299 = vpop.f32.mrf.mxu0
      %v1300 = vadd.f32 %v1205, %v1299
      %1301 = vmatmul.bf16.gmra.mxu0 %v1277
      %v1302 = vpop.f32.mrf.mxu0
      %v1303 = vadd.f32 %v1210, %v1302
      %v1304 = vpop.f32.mrf.mxu0
      %v1305 = vadd.f32 %v1215, %v1304
      %1306 = vmatmul.bf16.gmra.mxu0 %v1280
      %v1307 = vpop.f32.mrf.mxu0
      %v1308 = vadd.f32 %v1220, %v1307
      %v1309 = vpop.f32.mrf.mxu0
      %1310 = vdwg.mxu0
      %1311 = vmatpush.bf16.msra.mxu0 0
      %1312 = vmatpush.bf16.msra.mxu0 0
      %1313 = vmatpush.bf16.msra.mxu0 0
      %1314 = vmatpush.bf16.msra.mxu0 0
      %1315 = vmatpush.bf16.msra.mxu0 0
      %1316 = vmatpush.bf16.msra.mxu0 %v1286
      %1317 = vmatpush.bf16.msra.mxu0 %v1266
      %1318 = vmatpush.bf16.msra.mxu0 %v1264
      %1319 = vmatmul.bf16.gmra.mxu0 %v1274
      %v1320 = vpop.f32.mrf.mxu0
      %v1321 = vadd.f32 %v1200, %v1320
      %v1322 = vpop.f32.mrf.mxu0
      %v1323 = vadd.f32 %v1205, %v1322
      %1324 = vmatmul.bf16.gmra.mxu0 %v1277
      %v1325 = vpop.f32.mrf.mxu0
      %v1326 = vadd.f32 %v1210, %v1325
      %v1327 = vpop.f32.mrf.mxu0
      %v1328 = vadd.f32 %v1215, %v1327
      %1329 = vmatmul.bf16.gmra.mxu0 %v1280
      %v1330 = vpop.f32.mrf.mxu0
      %v1331 = vadd.f32 %v1220, %v1330
      %v1332 = vpop.f32.mrf.mxu0
      %1333 = vdwg.mxu0
      %1334 = vst [vmem:[%s305] sm:$0xff] %v1298
      %1335 = vst [vmem:[%s305 + $0x8] sm:$0xff] %v1321
      %1336 = vst [vmem:[%s305 + $0x10] sm:$0xff] %v1300
      %1337 = vst [vmem:[%s305 + $0x18] sm:$0xff] %v1323
      %1338 = vst [vmem:[%s305 + $0x20] sm:$0xff] %v1303
      %1339 = vst [vmem:[%s305 + $0x28] sm:$0xff] %v1326
      %1340 = vst [vmem:[%s305 + $0x30] sm:$0xff] %v1305
      %1341 = vst [vmem:[%s305 + $0x38] sm:$0xff] %v1328
      %1342 = vst [vmem:[%s305 + $0x40] sm:$0xf] %v1308
      %1343 = vst [vmem:[%s305 + $0x48] sm:$0xf] %v1331
      %p1344 = scmp.lt.s32.totalorder %s19, 1
      %s1345 = scalar_select %p1344, %s19, 1
      %s1346 = smul.addr %s1345, 10
      %s1347 = smul.addr %s1346, 8
      %s1348 = scalar_lea.vmem %s8, %s1347
      // Predicated region
      $region53: #{shifted_pillars_np9_forward.1} parent=51 // pred_check
        %p1349 = pneg %p210
      $region54: #{shifted_pillars_np9_forward.1} parent=51 // pred_check_branch
        %1351 = sbr.rel (%p1349) target = $region56
      $region55: #{shifted_pillars_np9_forward.1} parent=51 // pred_region
        _
      $region56: #{shifted_pillars_np9_forward.1} parent=51 // pred_fallthru
        _
    $region52: #{shifted_pillars_np9_forward.1} parent=5 // pred_fallthru
      _
    %p1352 = scmp.le.s32.totalorder 2, %s14
    // Predicated region
    $region57: #{shifted_pillars_np9_forward.1} parent=5 // pred_check
      %p1353 = pneg %p1352
    $region58: #{shifted_pillars_np9_forward.1} parent=5 // pred_check_branch
      %1355 = sbr.rel (%p1353) target = $region60
    $region59: #{shifted_pillars_np9_forward.1} parent=5 // pred_region
      %s1356 = ssub.s32 %s14, 2
      // Predicated region
      $region61: #{shifted_pillars_np9_forward.1} parent=59 // pred_check
        %p1357 = pneg %p216
      $region62: #{shifted_pillars_np9_forward.1} parent=59 // pred_check_branch
        %1359 = sbr.rel (%p1357) target = $region64
      $region63: #{shifted_pillars_np9_forward.1} parent=59 // pred_region
        %p1360 = scmp.lt.s32.totalorder %s20, 1
        %s1361 = scalar_select %p1360, %s20, 1
        %s1362 = smul.addr %s1361, 10
        %s1363 = smul.addr %s1362, 8
        %s1364 = scalar_lea.vmem %s8, %s1363
      $region64: #{shifted_pillars_np9_forward.1} parent=59 // pred_fallthru
        _
    $region60: #{shifted_pillars_np9_forward.1} parent=5 // pred_fallthru
      _
  $region6: #{shifted_pillars_np9_forward.1} parent=0 // loop_footer
    %s18 = sadd.s32 1, %s14
  $region7: #{shifted_pillars_np9_forward.1} parent=0 // loop_footer_branch
    %13 = sbr.rel target = $region3
  $region8: #{shifted_pillars_np9_forward.1} parent=0 // loop_exit
    _

</llo_original>
